<compile_context>
chip_gen: v7x
topology: tpu7x:2x2x1
jax: 0.10.0
libtpu: 0.0.40
codegen_flags: <defaults>
</compile_context>

<pallas_src>
import jax
import jax.numpy as jnp
from jax.experimental import pallas as pl
from jax.experimental.pallas import tpu as pltpu

BN_EPS = 1e-5


def _round_up(n, m):
    return ((n + m - 1) // m) * m


def _vmem_limit_bytes():
    """~72% of the local chip's physical VMEM (v7x: ~46 MiB, v5e/v6e: ~92 MiB)."""
    try:
        cap = pltpu.get_tpu_info().vmem_capacity_bytes
    except Exception:
        cap = 64 * 1024 * 1024  # conservative (v7x-sized) fallback
    return int(min(cap * 0.72, 100 * 1024 * 1024))


def _pick_batch_tile(B, L, HP, vmem_limit, target_rows=1024):
    """Pick TB so M = TB*L is ~target_rows, bounded by VMEM and the real batch."""
    # ~32*HP bytes of f32 intermediates + bf16 scratch live per activation row;
    # keep the activation working set under ~half the VMEM budget.
    max_rows = max(L, (vmem_limit // 2) // (32 * HP))
    rows = min(target_rows, max_rows)
    tb = _round_up(max(1, rows // L), 8)
    tb = min(tb, _round_up(B, 8))
    return max(tb, 8)


def _make_kernel(num_layers, seq_len, input_dim, hidden_p):
    L = seq_len
    HP = hidden_p

    def kernel(x_ref, w_ref, bss_ref, fcw_ref, fcb_ref, out_ref, h_ref):
        # x_ref   : (TB, L, input_dim) f32         -- streamed per batch tile
        # w_ref   : (KP, 3*HP) bf16                -- this layer's stacked-tap weight
        # bss_ref : (3, HP) f32                    -- [bias; BN scale; BN shift]
        # fcw_ref : (HP, OP) bf16  (1/L folded in) -- constant
        # fcb_ref : (1, OP) f32                    -- constant
        # out_ref : (TB, OP) f32                   -- resident across the layer axis
        # h_ref   : (TB*L, KP) bf16 VMEM scratch   -- activation carried across layers
        layer = pl.program_id(1)
        TB = x_ref.shape[0]
        KP = h_ref.shape[1]
        M = TB * L

        # Layer 0: lane-pad the (small) input channel dim into the scratch once.
        @pl.when(layer == 0)
        def _():
            h_ref[...] = jnp.zeros_like(h_ref)
            h_ref[:, :input_dim] = (
                x_ref[...].reshape(M, input_dim).astype(h_ref.dtype))

        # Conv1d(k=3, p=1) as one MXU matmul with the 3 taps stacked on the N dim.
        z = jnp.dot(h_ref[...], w_ref[...], preferred_element_type=jnp.float32)
        z_m1 = z[:, :HP]            # tap applied to x[t-1]
        z_00 = z[:, HP:2 * HP]      # tap applied to x[t]
        z_p1 = z[:, 2 * HP:]        # tap applied to x[t+1]

        # Time index within each sequence (iota on the time dim, no integer mod);
        # boundary compares derived right at the use.  Tap outputs are shifted in
        # time with XLU rolls; circular-wrap rows are exactly the masked rows.
        t = jax.lax.broadcasted_iota(jnp.int32, (TB, L, HP), 1).reshape(M, HP)
        y = (z_00
             + jnp.where(t > 0, pltpu.roll(z_m1, shift=1, axis=0), 0.0)
             + jnp.where(t < L - 1, pltpu.roll(z_p1, shift=M - 1, axis=0), 0.0)
             + bss_ref[0:1, :])
        # ReLU, then eval-mode BatchNorm folded to scale/shift (f32 epilogue).
        # Dropout is identity in eval mode.
        h_new = jnp.maximum(y, 0.0) * bss_ref[1:2, :] + bss_ref[2:3, :]
        h_ref[:, :HP] = h_new.astype(h_ref.dtype)

        # Last layer: global average pool (as a sum; 1/L is folded into fcw) + FC.
        @pl.when(layer == num_layers - 1)
        def _():
            pooled = jnp.sum(h_new.reshape(TB, L, HP), axis=1)          # (TB, HP)
            out = jnp.dot(pooled.astype(jnp.bfloat16), fcw_ref[...],
                          preferred_element_type=jnp.float32) + fcb_ref[...]
            out_ref[...] = out.astype(out_ref.dtype)

    return kernel


def prepare_params(params, *, input_dim, hidden_dim, num_layers, num_classes, seq_len):
    """One-time packing: stacked-tap conv weights, folded BN, padded FC (all device arrays)."""
    HP = _round_up(hidden_dim, 128)
    KP = max(HP, _round_up(input_dim, 128))
    OP = _round_up(num_classes, 128)

    w_all = jnp.zeros((num_layers, KP, 3 * HP), jnp.float32)
    bss_all = jnp.zeros((num_layers, 3, HP), jnp.float32)
    for i, p in enumerate(params["layers"]):
        cin = input_dim if i == 0 else hidden_dim
        w = p["w"]                                     # (hidden, cin, 3) torch layout
        for k in range(3):                             # tap k corresponds to x[t + k - 1]
            w_all = w_all.at[i, :cin, k * HP:k * HP + hidden_dim].set(
                jnp.transpose(w[:, :, k]))
        scale = p["gamma"] / jnp.sqrt(p["running_var"] + BN_EPS)
        shift = p["beta"] - p["running_mean"] * scale
        bss_all = bss_all.at[i, 0, :hidden_dim].set(p["b"])
        bss_all = bss_all.at[i, 1, :hidden_dim].set(scale)
        bss_all = bss_all.at[i, 2, :hidden_dim].set(shift)

    fcw = jnp.zeros((HP, OP), jnp.float32).at[:hidden_dim, :num_classes].set(
        jnp.transpose(params["fc_w"]) / float(seq_len))     # fold GAP's 1/L
    fcb = jnp.zeros((1, OP), jnp.float32).at[0, :num_classes].set(params["fc_b"])

    return {
        "w_all": w_all.astype(jnp.bfloat16),
        "bss_all": bss_all,
        "fcw": fcw.astype(jnp.bfloat16),
        "fcb": fcb,
        "dims": (input_dim, hidden_dim, num_layers, num_classes, seq_len, KP, HP, OP),
    }


def stock_inception_time_pallas(x, prep, *, batch_tile=None):
    """x: (B, L, input_dim), like the PyTorch module's input (pre-transpose)."""
    input_dim, hidden_dim, num_layers, num_classes, seq_len, KP, HP, OP = prep["dims"]
    B, L, cin = x.shape
    assert L == seq_len and cin == input_dim

    vmem_limit = _vmem_limit_bytes()
    TB = batch_tile if batch_tile is not None else _pick_batch_tile(B, L, HP, vmem_limit)
    B_pad = _round_up(B, TB)
    if x.dtype != jnp.float32:
        x = x.astype(jnp.float32)
    if B_pad != B:
        x = jnp.zeros((B_pad, L, cin), jnp.float32).at[:B].set(x)

    n_bt = B_pad // TB
    grid = (n_bt, num_layers)

    cost = pl.CostEstimate(
        flops=int(2 * B_pad * L * KP * 3 * HP * num_layers + 2 * B_pad * HP * OP),
        transcendentals=0,
        bytes_accessed=int(B_pad * L * cin * 4
                           + n_bt * num_layers * (KP * 3 * HP * 2 + 3 * HP * 4)
                           + HP * OP * 2 + OP * 4
                           + B_pad * OP * 4),
    )

    out = pl.pallas_call(
        _make_kernel(num_layers, L, input_dim, HP),
        grid=grid,
        out_shape=jax.ShapeDtypeStruct((B_pad, OP), jnp.float32),
        in_specs=[
            # activations: streamed per batch tile, un-padded channel dim
            pl.BlockSpec((TB, L, cin), lambda b, l: (b, 0, 0)),
            # per-layer stacked-tap weight: streamed along the layer grid axis
            pl.BlockSpec((None, KP, 3 * HP), lambda b, l: (l, 0, 0)),
            # per-layer [bias; scale; shift] packed into one block
            pl.BlockSpec((None, 3, HP), lambda b, l: (l, 0, 0)),
            # FC weight / bias: constant blocks
            pl.BlockSpec((HP, OP), lambda b, l: (0, 0)),
            pl.BlockSpec((1, OP), lambda b, l: (0, 0)),
        ],
        out_specs=pl.BlockSpec((TB, OP), lambda b, l: (b, 0)),
        scratch_shapes=[pltpu.VMEM((TB * L, KP), jnp.bfloat16)],
        compiler_params=pltpu.CompilerParams(
            dimension_semantics=("parallel", "arbitrary"),
            vmem_limit_bytes=vmem_limit,
        ),
        cost_estimate=cost,
    )(x, prep["w_all"], prep["bss_all"], prep["fcw"], prep["fcb"])

    return out[:B, :num_classes]


def reference_forward(x, params):
    """Pure-JAX f32 reference mirroring the PyTorch forward (eval mode)."""
    h = jnp.transpose(x, (0, 2, 1))                            # (B, C, L) like PyTorch
    for p in params["layers"]:
        y = jax.lax.conv_general_dilated(
            h, p["w"], window_strides=(1,), padding=((1, 1),),
            dimension_numbers=("NCH", "OIH", "NCH"))
        y = y + p["b"][None, :, None]
        y = jnp.maximum(y, 0.0)
        y = ((y - p["running_mean"][None, :, None])
             / jnp.sqrt(p["running_var"][None, :, None] + BN_EPS)
             * p["gamma"][None, :, None] + p["beta"][None, :, None])
        h = y                                                   # dropout: identity (eval)
    pooled = jnp.mean(h, axis=-1)                               # (B, H)
    return pooled @ params["fc_w"].T + params["fc_b"]


def init_params(key, input_dim, hidden_dim, num_layers, num_classes):
    layers = []
    for i in range(num_layers):
        cin = input_dim if i == 0 else hidden_dim
        key, k1, k2, k3, k4, k5, k6 = jax.random.split(key, 7)
        layers.append({
            "w": 0.1 * jax.random.normal(k1, (hidden_dim, cin, 3), jnp.float32),
            "b": 0.1 * jax.random.normal(k2, (hidden_dim,), jnp.float32),
            "gamma": 1.0 + 0.1 * jax.random.normal(k3, (hidden_dim,), jnp.float32),
            "beta": 0.1 * jax.random.normal(k4, (hidden_dim,), jnp.float32),
            "running_mean": 0.1 * jax.random.normal(k5, (hidden_dim,), jnp.float32),
            "running_var": jax.random.uniform(k6, (hidden_dim,), jnp.float32, 0.5, 1.5),
        })
    key, k1, k2 = jax.random.split(key, 3)
    return {
        "layers": layers,
        "fc_w": 0.1 * jax.random.normal(k1, (num_classes, hidden_dim), jnp.float32),
        "fc_b": 0.1 * jax.random.normal(k2, (num_classes,), jnp.float32),
    }


if __name__ == "__main__":
    batch, seq_len = 16, 16
    input_dim, hidden_dim, num_layers, num_classes = 4, 32, 2, 3

    key = jax.random.PRNGKey(0)
    key, kx = jax.random.split(key)
    x = jax.random.normal(kx, (batch, seq_len, input_dim), jnp.float32)
    params = init_params(key, input_dim, hidden_dim, num_layers, num_classes)

    # One-time parameter packing (padding, BN folding, bf16 casts, 1/L fold).
    prep = prepare_params(params, input_dim=input_dim, hidden_dim=hidden_dim,
                          num_layers=num_layers, num_classes=num_classes,
                          seq_len=seq_len)

    out = jax.block_until_ready(stock_inception_time_pallas(x, prep))

    ref = reference_forward(x, params)
    assert out.shape == (batch, num_classes)
    # bf16 MXU operands / bf16 inter-layer activations (f32 accumulation & epilogue).
    assert jnp.allclose(out, ref, atol=2e-2, rtol=2e-2), (out, ref)

    # TODO(synk): training-mode BatchNorm (batch statistics) and stochastic Dropout are
    # not implemented; kernel reproduces eval-mode forward semantics.
    print("KERNEL_OK")
</pallas_src>

<mosaic_0001>
module attributes {stable_mosaic.version = 11 : i64} {
  func.func @kernel(%arg0: i32, %arg1: i32, %arg2: memref<16x16x4xf32, #tpu.memory_space<vmem>>, %arg3: memref<1x128x384xbf16, #tpu.memory_space<vmem>>, %arg4: memref<1x3x128xf32, #tpu.memory_space<vmem>>, %arg5: memref<128x128xbf16, #tpu.memory_space<vmem>>, %arg6: memref<1x128xf32, #tpu.memory_space<vmem>>, %arg7: memref<16x128xf32, #tpu.memory_space<vmem>>, %arg8: memref<256x128xbf16, #tpu.memory_space<vmem>>) attributes {dimension_semantics = [#tpu.dimension_semantics<parallel>, #tpu.dimension_semantics<arbitrary>], iteration_bounds = array<i64: 1, 2>, scalar_prefetch = 0 : i64, scratch_operands = 1 : i64, tpu.core_type = #tpu.core_type<tc>, window_params = [{transform_indices = @transform_0, window_bounds = array<i64: 16, 16, 4>}, {transform_indices = @transform_1, window_bounds = array<i64: 1, 128, 384>}, {transform_indices = @transform_2, window_bounds = array<i64: 1, 3, 128>}, {pipeline_mode = #tpu.pipeline_mode<synchronous>, transform_indices = @transform_3, window_bounds = array<i64: 128, 128>}, {pipeline_mode = #tpu.pipeline_mode<synchronous>, transform_indices = @transform_4, window_bounds = array<i64: 1, 128>}, {transform_indices = @transform_5, window_bounds = array<i64: 16, 128>}]} {
    %c0_i32 = arith.constant 0 : i32
    %0 = arith.cmpi eq, %arg1, %c0_i32 : i32
    %1 = arith.extui %0 : i1 to i32
    %c0_i32_0 = arith.constant 0 : i32
    %2 = arith.cmpi ne, %1, %c0_i32_0 : i32
    scf.if %2 {
      %cst_20 = arith.constant 0.000000e+00 : bf16
      %43 = vector.broadcast %cst_20 : bf16 to vector<256x128xbf16>
      %c0_21 = arith.constant 0 : index
      %c0_22 = arith.constant 0 : index
      %44 = vector.load %arg8[%c0_21, %c0_22] : memref<256x128xbf16, #tpu.memory_space<vmem>>, vector<256x128xbf16>
      tpu.vector_store %arg8[%c0_21, %c0_22], %43 {strides = array<i32>} : memref<256x128xbf16, #tpu.memory_space<vmem>>, vector<256x128xbf16>,
      %c0_23 = arith.constant 0 : index
      %c0_24 = arith.constant 0 : index
      %c0_25 = arith.constant 0 : index
      %45 = vector.load %arg2[%c0_23, %c0_24, %c0_25] : memref<16x16x4xf32, #tpu.memory_space<vmem>>, vector<16x16x4xf32>
      %46 = vector.shape_cast %45 : vector<16x16x4xf32> to vector<256x4xf32>
      %47 = arith.truncf %46 : vector<256x4xf32> to vector<256x4xbf16>
      %c0_26 = arith.constant 0 : index
      %c0_27 = arith.constant 0 : index
      %48 = vector.load %arg8[%c0_26, %c0_27] : memref<256x128xbf16, #tpu.memory_space<vmem>>, vector<256x4xbf16>
      tpu.vector_store %arg8[%c0_26, %c0_27], %47 {strides = array<i32>} : memref<256x128xbf16, #tpu.memory_space<vmem>>, vector<256x4xbf16>,
    } else {
    }
    %c0 = arith.constant 0 : index
    %c0_1 = arith.constant 0 : index
    %3 = vector.load %arg8[%c0, %c0_1] : memref<256x128xbf16, #tpu.memory_space<vmem>>, vector<256x128xbf16>
    %c0_2 = arith.constant 0 : index
    %c0_3 = arith.constant 0 : index
    %c0_4 = arith.constant 0 : index
    %4 = vector.load %arg3[%c0_2, %c0_3, %c0_4] : memref<1x128x384xbf16, #tpu.memory_space<vmem>>, vector<1x128x384xbf16>
    %5 = vector.shape_cast %4 : vector<1x128x384xbf16> to vector<128x384xbf16>
    %cst = arith.constant dense<0.000000e+00> : vector<256x384xf32>
    %6 = tpu.matmul %3, %5, %cst {dimension_numbers = #tpu.dot_dimension_numbers<[1], [0], [0], [1], [0, 0, 1, 1], [], []>} : vector<256x128xbf16>, vector<128x384xbf16>, vector<256x384xf32> -> vector<256x384xf32>
    %7 = vector.extract_strided_slice %6 {offsets = [0, 0], sizes = [256, 128], strides = [1, 1]} : vector<256x384xf32> to vector<256x128xf32>
    %8 = vector.extract_strided_slice %6 {offsets = [0, 128], sizes = [256, 128], strides = [1, 1]} : vector<256x384xf32> to vector<256x128xf32>
    %9 = vector.extract_strided_slice %6 {offsets = [0, 256], sizes = [256, 128], strides = [1, 1]} : vector<256x384xf32> to vector<256x128xf32>
    %10 = tpu.iota {dimensions = array<i32: 1>} : vector<16x16x128xi32>
    %11 = vector.shape_cast %10 : vector<16x16x128xi32> to vector<256x128xi32>
    %c0_i32_5 = arith.constant 0 : i32
    %12 = vector.broadcast %c0_i32_5 : i32 to vector<256x128xi32>
    %13 = arith.cmpi sgt, %11, %12 : vector<256x128xi32>
    %c1_i32 = arith.constant 1 : i32
    %14 = tpu.dynamic_rotate %7 by %c1_i32 dim 0 : vector<256x128xf32>, i32 -> vector<256x128xf32>
    %cst_6 = arith.constant 0.000000e+00 : f32
    %15 = vector.broadcast %cst_6 : f32 to vector<256x128xf32>
    %16 = arith.select %13, %14, %15 : vector<256x128xi1>, vector<256x128xf32>
    %17 = arith.addf %8, %16 : vector<256x128xf32>
    %c15_i32 = arith.constant 15 : i32
    %18 = vector.broadcast %c15_i32 : i32 to vector<256x128xi32>
    %19 = arith.cmpi slt, %11, %18 : vector<256x128xi32>
    %c255_i32 = arith.constant 255 : i32
    %20 = tpu.dynamic_rotate %9 by %c255_i32 dim 0 : vector<256x128xf32>, i32 -> vector<256x128xf32>
    %cst_7 = arith.constant 0.000000e+00 : f32
    %21 = vector.broadcast %cst_7 : f32 to vector<256x128xf32>
    %22 = arith.select %19, %20, %21 : vector<256x128xi1>, vector<256x128xf32>
    %23 = arith.addf %17, %22 : vector<256x128xf32>
    %c0_8 = arith.constant 0 : index
    %c0_9 = arith.constant 0 : index
    %c0_10 = arith.constant 0 : index
    %24 = vector.load %arg4[%c0_8, %c0_9, %c0_10] : memref<1x3x128xf32, #tpu.memory_space<vmem>>, vector<1x1x128xf32>
    %25 = vector.shape_cast %24 : vector<1x1x128xf32> to vector<1x128xf32>
    %26 = vector.broadcast %25 : vector<1x128xf32> to vector<256x128xf32>
    %27 = arith.addf %23, %26 : vector<256x128xf32>
    %cst_11 = arith.constant 0.000000e+00 : f32
    %28 = vector.broadcast %cst_11 : f32 to vector<256x128xf32>
    %29 = arith.maximumf %27, %28 : vector<256x128xf32>
    %c0_12 = arith.constant 0 : index
    %c1 = arith.constant 1 : index
    %c0_13 = arith.constant 0 : index
    %30 = vector.load %arg4[%c0_12, %c1, %c0_13] : memref<1x3x128xf32, #tpu.memory_space<vmem>>, vector<1x1x128xf32>
    %31 = vector.shape_cast %30 : vector<1x1x128xf32> to vector<1x128xf32>
    %32 = vector.broadcast %31 : vector<1x128xf32> to vector<256x128xf32>
    %33 = arith.mulf %29, %32 : vector<256x128xf32>
    %c0_14 = arith.constant 0 : index
    %c2 = arith.constant 2 : index
    %c0_15 = arith.constant 0 : index
    %34 = vector.load %arg4[%c0_14, %c2, %c0_15] : memref<1x3x128xf32, #tpu.memory_space<vmem>>, vector<1x1x128xf32>
    %35 = vector.shape_cast %34 : vector<1x1x128xf32> to vector<1x128xf32>
    %36 = vector.broadcast %35 : vector<1x128xf32> to vector<256x128xf32>
    %37 = arith.addf %33, %36 : vector<256x128xf32>
    %38 = arith.truncf %37 : vector<256x128xf32> to vector<256x128xbf16>
    %c0_16 = arith.constant 0 : index
    %c0_17 = arith.constant 0 : index
    %39 = vector.load %arg8[%c0_16, %c0_17] : memref<256x128xbf16, #tpu.memory_space<vmem>>, vector<256x128xbf16>
    tpu.vector_store %arg8[%c0_16, %c0_17], %38 {strides = array<i32>} : memref<256x128xbf16, #tpu.memory_space<vmem>>, vector<256x128xbf16>,
    %c1_i32_18 = arith.constant 1 : i32
    %40 = arith.cmpi eq, %arg1, %c1_i32_18 : i32
    %41 = arith.extui %40 : i1 to i32
    %c0_i32_19 = arith.constant 0 : i32
    %42 = arith.cmpi ne, %41, %c0_i32_19 : i32
    scf.if %42 {
      %43 = vector.shape_cast %37 : vector<256x128xf32> to vector<16x16x128xf32>
      %cst_20 = arith.constant dense<0.000000e+00> : vector<16x128xf32>
      %44 = vector.multi_reduction <add>, %43, %cst_20 [1] : vector<16x16x128xf32> to vector<16x128xf32>
      %45 = arith.truncf %44 : vector<16x128xf32> to vector<16x128xbf16>
      %c0_21 = arith.constant 0 : index
      %c0_22 = arith.constant 0 : index
      %46 = vector.load %arg5[%c0_21, %c0_22] : memref<128x128xbf16, #tpu.memory_space<vmem>>, vector<128x128xbf16>
      %cst_23 = arith.constant dense<0.000000e+00> : vector<16x128xf32>
      %47 = tpu.matmul %45, %46, %cst_23 {dimension_numbers = #tpu.dot_dimension_numbers<[1], [0], [0], [1], [0, 0, 1, 1], [], []>} : vector<16x128xbf16>, vector<128x128xbf16>, vector<16x128xf32> -> vector<16x128xf32>
      %c0_24 = arith.constant 0 : index
      %c0_25 = arith.constant 0 : index
      %48 = vector.load %arg6[%c0_24, %c0_25] : memref<1x128xf32, #tpu.memory_space<vmem>>, vector<1x128xf32>
      %49 = vector.broadcast %48 : vector<1x128xf32> to vector<16x128xf32>
      %50 = arith.addf %47, %49 : vector<16x128xf32>
      %c0_26 = arith.constant 0 : index
      %c0_27 = arith.constant 0 : index
      %51 = vector.load %arg7[%c0_26, %c0_27] : memref<16x128xf32, #tpu.memory_space<vmem>>, vector<16x128xf32>
      tpu.vector_store %arg7[%c0_26, %c0_27], %50 {strides = array<i32>} : memref<16x128xf32, #tpu.memory_space<vmem>>, vector<16x128xf32>,
    } else {
    }
    return
  }
  func.func @transform_0(%arg0: i32, %arg1: i32) -> (i32, i32, i32) {
    %c0_i32 = arith.constant 0 : i32
    %c0_i32_0 = arith.constant 0 : i32
    %c0_i32_1 = arith.constant 0 : i32
    return %arg0, %c0_i32, %c0_i32_0 : i32, i32, i32
  }
  func.func @transform_1(%arg0: i32, %arg1: i32) -> (i32, i32, i32) {
    %c0_i32 = arith.constant 0 : i32
    %c0_i32_0 = arith.constant 0 : i32
    %c0_i32_1 = arith.constant 0 : i32
    return %arg1, %c0_i32, %c0_i32_0 : i32, i32, i32
  }
  func.func @transform_2(%arg0: i32, %arg1: i32) -> (i32, i32, i32) {
    %c0_i32 = arith.constant 0 : i32
    %c0_i32_0 = arith.constant 0 : i32
    %c0_i32_1 = arith.constant 0 : i32
    return %arg1, %c0_i32, %c0_i32_0 : i32, i32, i32
  }
  func.func @transform_3(%arg0: i32, %arg1: i32) -> (i32, i32) {
    %c0_i32 = arith.constant 0 : i32
    %c0_i32_0 = arith.constant 0 : i32
    %c0_i32_1 = arith.constant 0 : i32
    return %c0_i32, %c0_i32_0 : i32, i32
  }
  func.func @transform_4(%arg0: i32, %arg1: i32) -> (i32, i32) {
    %c0_i32 = arith.constant 0 : i32
    %c0_i32_0 = arith.constant 0 : i32
    %c0_i32_1 = arith.constant 0 : i32
    return %c0_i32, %c0_i32_0 : i32, i32
  }
  func.func @transform_5(%arg0: i32, %arg1: i32) -> (i32, i32) {
    %c0_i32 = arith.constant 0 : i32
    %c0_i32_0 = arith.constant 0 : i32
    return %arg0, %c0_i32 : i32, i32
  }
}

</mosaic_0001>

<llo_original>
// kernel: tpu_custom_call.1
$region0: #{tpu_custom_call.1}
  #allocation0 [shape = 'u32[]', space=smem, size = 0x4, offset = 0x4, fixed_abs, tag = 'smem constant byte address 0x4 - core index']
  #allocation1 [shape = 'u32[144,128]{1,0:T(1,128)}', space=vmem, size = 0x12000, scoped, tag = 'internal scratch']
  #allocation2 [shape = 'bf16[256,128]{1,0:T(16,128)(2,1)}', space=vmem, size = 0x10000, scoped, tag = 'scratch operand']
  %s0 = inlined_call_operand.vmem [shape: f32[16,16,4], index: 0, kind: input, shape index: {}]
  %s1 = inlined_call_operand.hbm [shape: bf16[2,128,384], index: 1, kind: input, shape index: {}]
  %s2 = inlined_call_operand.vmem [shape: f32[2,3,128], index: 2, kind: input, shape index: {}]
  %s3 = inlined_call_operand.vmem [shape: bf16[128,128], index: 3, kind: input, shape index: {}]
  %s4 = inlined_call_operand.vmem [shape: f32[1,128], index: 4, kind: input, shape index: {}]
  %s5 = inlined_call_operand.hbm [shape: f32[16,128], index: 5, kind: output, shape index: {}]
  %s6 = sld [smem:[#allocation0]]
  $region65: #{tpu_custom_call.1} parent=0
    _
  %s8 = ssub.s32 1, %s6
  %s9 = scalar_select 0, %s8, %s6
  $region1: #{tpu_custom_call.1} parent=0
    #allocation3 [shape = 'u8[196608]{0}', space=vmem, size = 0x30000, scoped, tag = 'input window, operand 1']
    #allocation4 [shape = 's32[2]{0}', space=sflag, size = 0x8, scoped, tag = 'scoped memory for tpu_custom_call.1']
    #allocation5 [shape = 's32[2]{0}', space=sflag, size = 0x8, scoped, tag = 'scoped memory for tpu_custom_call.1']
    #allocation6 [shape = 'u8[8192]{0}', space=vmem, size = 0x2000, scoped, tag = 'output window, operand 0, single buffered']
    %10 = vsyncpa [#allocation4], 0
    %s11 = scalar_lea.sflag [#allocation4], 1
    %12 = vsyncpa %s11, 0
    %13 = vsyncpa [#allocation5], 0
    loop: start=0, step=1, limit=4
    $region2: #{tpu_custom_call.1} parent=1 // loop_pre_header
      _
    $region3: #{tpu_custom_call.1} parent=1 // loop_header
      %s15 = sphi 0, %s19
      %p16 = scmp.ge.s32.totalorder %s15, 4
      %s22 = sphi 0, %s34
      %s23 = sphi 0, %s30
      %s24 = sphi 0, %s22
      %s25 = sphi 0, %s23
      %s26 = sphi 0, %s24
      %s27 = sphi 0, %s25
      %s37 = sphi 0, %s39
      %s40 = sphi 0, %s37
      %s41 = sphi 0, %s40
      %s57 = sphi 0, %s41
      %s63 = sphi 0, %s65
      %s66 = sphi 0, %s63
      %s67 = sphi 0, %s66
      %s83 = sphi 0, %s67
      %s89 = sphi 0, %s91
      %s92 = sphi 0, %s89
      %s93 = sphi 0, %s92
      %s109 = sphi 0, %s93
      %s113 = sphi 0, %s113
      %s115 = sphi 0, %s113
      %s116 = sphi 0, %s115
      %s130 = sphi 0, %s116
      %s134 = sphi 0, %s134
      %s136 = sphi 0, %s134
      %s137 = sphi 0, %s136
      %s151 = sphi 0, %s137
      %s157 = sphi 0, %s159
      %s160 = sphi 0, %s157
      %s161 = sphi 0, %s160
      %s177 = sphi 0, %s161
    $region4: #{tpu_custom_call.1} parent=1 // loop_header_branch
      %18 = sbr.rel (%p16) target = $region8
    $region5: #{tpu_custom_call.1} parent=1 // loop_body
      %s20 = ssub.s32 %s15, 1
      %s21 = ssub.s32 %s15, 2
      %s28 = sadd.s32 1, %s23
      %p29 = scmp.ge.s32.totalorder %s28, 2
      %s30 = scalar_select %p29, 0, %s28
      %s31 = sadd.s32 1, %s22
      %s32 = scalar_select %p29, %s31, %s22
      %p33 = scmp.ge.s32.totalorder %s32, 1
      %s34 = scalar_select %p33, 0, %s32
      %s35 = ssub.s32 %s22, %s34
      %p36 = scmp.eq.s32.totalorder %s35, 0
      %s38 = sadd.s32 %s37, 1
      %s39 = scalar_select %p36, %s37, %s38
      %p42 = pneg %p36
      %p43 = scmp.eq.s32.totalorder %s15, 1
      %p44 = por %p42, %p43
      %p45 = scmp.ne.s32.totalorder %s37, %s40
      %p46 = scmp.eq.s32.totalorder %s15, 0
      %p47 = por %p45, %p46
      %p48 = scmp.ne.s32.totalorder %s37, %s40
      %p49 = scmp.eq.s32.totalorder %s20, 1
      %p50 = por %p48, %p49
      %p51 = scmp.ne.s32.totalorder %s40, %s41
      %p52 = scmp.eq.s32.totalorder %s20, 0
      %p53 = por %p51, %p52
      %p54 = scmp.ne.s32.totalorder %s40, %s41
      %p55 = scmp.eq.s32.totalorder %s21, 1
      %p56 = por %p54, %p55
      %p58 = scmp.ne.s32.totalorder %s41, %s57
      %p59 = scmp.eq.s32.totalorder %s21, 0
      %p60 = por %p58, %p59
      %s61 = ssub.s32 %s23, %s30
      %p62 = scmp.eq.s32.totalorder %s61, 0
      %s64 = sadd.s32 %s63, 1
      %s65 = scalar_select %p62, %s63, %s64
      %p68 = pneg %p62
      %p69 = scmp.eq.s32.totalorder %s15, 1
      %p70 = por %p68, %p69
      %p71 = scmp.ne.s32.totalorder %s63, %s66
      %p72 = scmp.eq.s32.totalorder %s15, 0
      %p73 = por %p71, %p72
      %p74 = scmp.ne.s32.totalorder %s63, %s66
      %p75 = scmp.eq.s32.totalorder %s20, 1
      %p76 = por %p74, %p75
      %p77 = scmp.ne.s32.totalorder %s66, %s67
      %p78 = scmp.eq.s32.totalorder %s20, 0
      %p79 = por %p77, %p78
      %p80 = scmp.ne.s32.totalorder %s66, %s67
      %p81 = scmp.eq.s32.totalorder %s21, 1
      %p82 = por %p80, %p81
      %p84 = scmp.ne.s32.totalorder %s67, %s83
      %p85 = scmp.eq.s32.totalorder %s21, 0
      %p86 = por %p84, %p85
      %s87 = ssub.s32 %s23, %s30
      %p88 = scmp.eq.s32.totalorder %s87, 0
      %s90 = sadd.s32 %s89, 1
      %s91 = scalar_select %p88, %s89, %s90
      %p94 = pneg %p88
      %p95 = scmp.eq.s32.totalorder %s15, 1
      %p96 = por %p94, %p95
      %p97 = scmp.ne.s32.totalorder %s89, %s92
      %p98 = scmp.eq.s32.totalorder %s15, 0
      %p99 = por %p97, %p98
      %p100 = scmp.ne.s32.totalorder %s89, %s92
      %p101 = scmp.eq.s32.totalorder %s20, 1
      %p102 = por %p100, %p101
      %p103 = scmp.ne.s32.totalorder %s92, %s93
      %p104 = scmp.eq.s32.totalorder %s20, 0
      %p105 = por %p103, %p104
      %p106 = scmp.ne.s32.totalorder %s92, %s93
      %p107 = scmp.eq.s32.totalorder %s21, 1
      %p108 = por %p106, %p107
      %p110 = scmp.ne.s32.totalorder %s93, %s109
      %p111 = scmp.eq.s32.totalorder %s21, 0
      %p112 = por %p110, %p111
      %s114 = sadd.s32 %s113, 1
      %p117 = scmp.eq.s32.totalorder %s15, 1
      %p118 = scmp.ne.s32.totalorder %s113, %s115
      %p119 = scmp.eq.s32.totalorder %s15, 0
      %p120 = por %p118, %p119
      %p121 = scmp.ne.s32.totalorder %s113, %s115
      %p122 = scmp.eq.s32.totalorder %s20, 1
      %p123 = por %p121, %p122
      %p124 = scmp.ne.s32.totalorder %s115, %s116
      %p125 = scmp.eq.s32.totalorder %s20, 0
      %p126 = por %p124, %p125
      %p127 = scmp.ne.s32.totalorder %s115, %s116
      %p128 = scmp.eq.s32.totalorder %s21, 1
      %p129 = por %p127, %p128
      %p131 = scmp.ne.s32.totalorder %s116, %s130
      %p132 = scmp.eq.s32.totalorder %s21, 0
      %p133 = por %p131, %p132
      %s135 = sadd.s32 %s134, 1
      %p138 = scmp.eq.s32.totalorder %s15, 1
      %p139 = scmp.ne.s32.totalorder %s134, %s136
      %p140 = scmp.eq.s32.totalorder %s15, 0
      %p141 = por %p139, %p140
      %p142 = scmp.ne.s32.totalorder %s134, %s136
      %p143 = scmp.eq.s32.totalorder %s20, 1
      %p144 = por %p142, %p143
      %p145 = scmp.ne.s32.totalorder %s136, %s137
      %p146 = scmp.eq.s32.totalorder %s20, 0
      %p147 = por %p145, %p146
      %p148 = scmp.ne.s32.totalorder %s136, %s137
      %p149 = scmp.eq.s32.totalorder %s21, 1
      %p150 = por %p148, %p149
      %p152 = scmp.ne.s32.totalorder %s137, %s151
      %p153 = scmp.eq.s32.totalorder %s21, 0
      %p154 = por %p152, %p153
      %s155 = ssub.s32 %s22, %s34
      %p156 = scmp.eq.s32.totalorder %s155, 0
      %s158 = sadd.s32 %s157, 1
      %s159 = scalar_select %p156, %s157, %s158
      %p162 = pneg %p156
      %p163 = scmp.eq.s32.totalorder %s15, 1
      %p164 = por %p162, %p163
      %p165 = scmp.ne.s32.totalorder %s157, %s160
      %p166 = scmp.eq.s32.totalorder %s15, 0
      %p167 = por %p165, %p166
      %p168 = scmp.ne.s32.totalorder %s157, %s160
      %p169 = scmp.eq.s32.totalorder %s20, 1
      %p170 = por %p168, %p169
      %p171 = scmp.ne.s32.totalorder %s160, %s161
      %p172 = scmp.eq.s32.totalorder %s20, 0
      %p173 = por %p171, %p172
      %p174 = scmp.ne.s32.totalorder %s160, %s161
      %p175 = scmp.eq.s32.totalorder %s21, 1
      %p176 = por %p174, %p175
      %p178 = scmp.ne.s32.totalorder %s161, %s177
      %p179 = scmp.eq.s32.totalorder %s21, 0
      %p180 = por %p178, %p179
      %p181 = scmp.le.s32.totalorder 1, %s15
      %p182 = scmp.lt.s32.totalorder %s15, 3
      %p183 = pnand %p181, %p182
      %p184 = pneg %p183
      // Predicated region
      $region9: #{tpu_custom_call.1} parent=5 // pred_check
        _
      $region10: #{tpu_custom_call.1} parent=5 // pred_check_branch
        %186 = sbr.rel (%p183) target = $region12
      $region11: #{tpu_custom_call.1} parent=5 // pred_region
        %s187 = ssub.s32 %s15, 1
        // Predicated region
        $region13: #{tpu_custom_call.1} parent=11 // pred_check
          %p188 = pneg %p53
        $region14: #{tpu_custom_call.1} parent=11 // pred_check_branch
          %190 = sbr.rel (%p188) target = $region16
        $region15: #{tpu_custom_call.1} parent=11 // pred_region
          %s191 = smul.u32 16, %s24
          %p192 = scmp.lt.s32.totalorder %s191, 15
          %s193 = scalar_select %p192, %s191, 15
          %s194 = smul.addr %s193, 2
          %s195 = smul.addr %s194, 8
          %s196 = scalar_lea.vmem %s0, %s195
          %s197 = smul.u32 16, %s24
        $region16: #{tpu_custom_call.1} parent=11 // pred_fallthru
          _
        // Predicated region
        $region17: #{tpu_custom_call.1} parent=11 // pred_check
          %p198 = pneg %p126
        $region18: #{tpu_custom_call.1} parent=11 // pred_check_branch
          %200 = sbr.rel (%p198) target = $region20
        $region19: #{tpu_custom_call.1} parent=11 // pred_region
          _
        $region20: #{tpu_custom_call.1} parent=11 // pred_fallthru
          _
        // Predicated region
        $region21: #{tpu_custom_call.1} parent=11 // pred_check
          %p201 = pneg %p147
        $region22: #{tpu_custom_call.1} parent=11 // pred_check_branch
          %203 = sbr.rel (%p201) target = $region24
        $region23: #{tpu_custom_call.1} parent=11 // pred_region
          _
        $region24: #{tpu_custom_call.1} parent=11 // pred_fallthru
          _
      $region12: #{tpu_custom_call.1} parent=5 // pred_fallthru
        _
      %p204 = scmp.lt.s32.totalorder %s15, 2
      // Predicated region
      $region25: #{tpu_custom_call.1} parent=5 // pred_check
        %p205 = pneg %p204
      $region26: #{tpu_custom_call.1} parent=5 // pred_check_branch
        %207 = sbr.rel (%p205) target = $region28
      $region27: #{tpu_custom_call.1} parent=5 // pred_region
        // Predicated region
        $region29: #{tpu_custom_call.1} parent=27 // pred_check
          %p208 = pneg %p73
        $region30: #{tpu_custom_call.1} parent=27 // pred_check_branch
          %210 = sbr.rel (%p208) target = $region32
        $region31: #{tpu_custom_call.1} parent=27 // pred_region
          %s211 = sand.u32 %s63, 1
          %s212 = scalar_lea.sflag [#allocation4], %s211
          %s213 = sand.u32 %s63, 1
          %s214 = smul.addr %s213, 192
          %s215 = scalar_lea.vmem [#allocation3], %s214
          %s217 = ssub.s32 3072, 3072
          %218 = vsyncadd %s212, %s217
          %s219 = smul.addr %s23, 48
          %s220 = smul.addr %s219, 64
          %s221 = scalar_lea.hbm %s1, %s220
          %s222 = sshll.u32 %s215, 4
          %s223 = int_to_ptr.vmem [resolvable:$true] %s222
          %228 = dma.hbm_to_vmem [thread:$0]  %s221, 3072, %s223, %s212, 192, 192, 12
        $region32: #{tpu_custom_call.1} parent=27 // pred_fallthru
          _
        // Predicated region
        $region33: #{tpu_custom_call.1} parent=27 // pred_check
          %p229 = pneg %p99
        $region34: #{tpu_custom_call.1} parent=27 // pred_check_branch
          %231 = sbr.rel (%p229) target = $region36
        $region35: #{tpu_custom_call.1} parent=27 // pred_region
          %p232 = scmp.lt.s32.totalorder %s23, 1
          %s233 = scalar_select %p232, %s23, 1
          %s234 = smul.addr %s233, 4
          %s235 = scalar_lea.vmem %s2, %s234
        $region36: #{tpu_custom_call.1} parent=27 // pred_fallthru
          _
      $region28: #{tpu_custom_call.1} parent=5 // pred_fallthru
        _
      %p236 = scmp.le.s32.totalorder 1, %s15
      %p237 = scmp.lt.s32.totalorder %s15, 3
      %p238 = pnand %p236, %p237
      %p239 = pneg %p238
      // Predicated region
      $region37: #{tpu_custom_call.1} parent=5 // pred_check
        _
      $region38: #{tpu_custom_call.1} parent=5 // pred_check_branch
        %241 = sbr.rel (%p238) target = $region40
      $region39: #{tpu_custom_call.1} parent=5 // pred_region
        %s242 = ssub.s32 %s15, 1
        %s243 = sand.u32 %s66, 1
        %s244 = scalar_lea.sflag [#allocation4], %s243
        %s245 = sand.u32 %s66, 1
        %s246 = smul.addr %s245, 192
        %s247 = scalar_lea.vmem [#allocation3], %s246
        // Predicated region
        $region41: #{tpu_custom_call.1} parent=39 // pred_check
          %p248 = pneg %p79
        $region42: #{tpu_custom_call.1} parent=39 // pred_check_branch
          %250 = sbr.rel (%p248) target = $region44
        $region43: #{tpu_custom_call.1} parent=39 // pred_region
          %251 = dma.done %s244, 3072
        $region44: #{tpu_custom_call.1} parent=39 // pred_fallthru
          _
        %s252 = smul.u32 16, %s24
        %p253 = scmp.lt.s32.totalorder %s252, 15
        %s254 = scalar_select %p253, %s252, 15
        %s255 = smul.addr %s254, 2
        %s256 = smul.addr %s255, 8
        %s257 = scalar_lea.vmem %s0, %s256
        %p258 = pneg %p53
        %p259 = pneg %p50
        %s260 = sand.u32 %s66, 1
        %s261 = scalar_lea.sflag [#allocation4], %s260
        %s262 = sand.u32 %s66, 1
        %s263 = smul.addr %s262, 192
        %s264 = scalar_lea.vmem [#allocation3], %s263
        %p265 = pneg %p79
        %p266 = pneg %p76
        %p267 = scmp.lt.s32.totalorder %s25, 1
        %s268 = scalar_select %p267, %s25, 1
        %s269 = smul.addr %s268, 4
        %s270 = scalar_lea.vmem %s2, %s269
        %p271 = pneg %p105
        %p272 = pneg %p102
        %p273 = pneg %p126
        %p274 = pneg %p123
        %p275 = pneg %p147
        %p276 = pneg %p144
        %p277 = pneg %p173
        %p278 = pneg %p170
        %s279 = smul.u32 16, %s24
        %p280 = scmp.lt.s32.totalorder %s279, 15
        %s281 = scalar_select %p280, %s279, 15
        %s282 = smul.addr %s281, 2
        %s283 = smul.addr %s282, 8
        %s284 = scalar_lea.vmem %s0, %s283
        %s285 = smul.u32 16, %s24
        %p286 = scmp.lt.s32.totalorder %s25, 1
        %s287 = scalar_select %p286, %s25, 1
        %s288 = smul.addr %s287, 4
        %s289 = scalar_lea.vmem %s2, %s288
        %s290 = smul.u32 2, %s24
        %p292 = scmp.eq.s32.totalorder %s25, 0
        // Predicated region
        $region45: #{tpu_custom_call.1} parent=39 // pred_check
          %p293 = pneg %p292
        $region46: #{tpu_custom_call.1} parent=39 // pred_check_branch
          %295 = sbr.rel (%p293) target = $region48
        $region47: #{tpu_custom_call.1} parent=39 // pred_region
          %296 = vst [vmem:[#allocation2] sm:$0xff] 0
          %297 = vst [vmem:[#allocation2 + $0x8] sm:$0xff] 0
          %298 = vst [vmem:[#allocation2 + $0x10] sm:$0xff] 0
          %299 = vst [vmem:[#allocation2 + $0x18] sm:$0xff] 0
          %300 = vst [vmem:[#allocation2 + $0x20] sm:$0xff] 0
          %301 = vst [vmem:[#allocation2 + $0x28] sm:$0xff] 0
          %302 = vst [vmem:[#allocation2 + $0x30] sm:$0xff] 0
          %303 = vst [vmem:[#allocation2 + $0x38] sm:$0xff] 0
          %304 = vst [vmem:[#allocation2 + $0x40] sm:$0xff] 0
          %305 = vst [vmem:[#allocation2 + $0x48] sm:$0xff] 0
          %306 = vst [vmem:[#allocation2 + $0x50] sm:$0xff] 0
          %307 = vst [vmem:[#allocation2 + $0x58] sm:$0xff] 0
          %308 = vst [vmem:[#allocation2 + $0x60] sm:$0xff] 0
          %309 = vst [vmem:[#allocation2 + $0x68] sm:$0xff] 0
          %310 = vst [vmem:[#allocation2 + $0x70] sm:$0xff] 0
          %311 = vst [vmem:[#allocation2 + $0x78] sm:$0xff] 0
          %v312 = vld [vmem:[%s284] sm:$0xff]
          %v313 = vld [vmem:[%s284 + $0x8] sm:$0xff]
          %v314 = vld [vmem:[%s284 + $0x10] sm:$0xff]
          %v315 = vld [vmem:[%s284 + $0x18] sm:$0xff]
          %v316 = vld [vmem:[%s284 + $0x20] sm:$0xff]
          %v317 = vld [vmem:[%s284 + $0x28] sm:$0xff]
          %v318 = vld [vmem:[%s284 + $0x30] sm:$0xff]
          %v319 = vld [vmem:[%s284 + $0x38] sm:$0xff]
          %v320 = vld [vmem:[%s284 + $0x40] sm:$0xff]
          %v321 = vld [vmem:[%s284 + $0x48] sm:$0xff]
          %v322 = vld [vmem:[%s284 + $0x50] sm:$0xff]
          %v323 = vld [vmem:[%s284 + $0x58] sm:$0xff]
          %v324 = vld [vmem:[%s284 + $0x60] sm:$0xff]
          %v325 = vld [vmem:[%s284 + $0x68] sm:$0xff]
          %v326 = vld [vmem:[%s284 + $0x70] sm:$0xff]
          %v327 = vld [vmem:[%s284 + $0x78] sm:$0xff]
          %v328 = vld [vmem:[%s284 + $0x80] sm:$0xff]
          %v329 = vld [vmem:[%s284 + $0x88] sm:$0xff]
          %v330 = vld [vmem:[%s284 + $0x90] sm:$0xff]
          %v331 = vld [vmem:[%s284 + $0x98] sm:$0xff]
          %v332 = vld [vmem:[%s284 + $0xa0] sm:$0xff]
          %v333 = vld [vmem:[%s284 + $0xa8] sm:$0xff]
          %v334 = vld [vmem:[%s284 + $0xb0] sm:$0xff]
          %v335 = vld [vmem:[%s284 + $0xb8] sm:$0xff]
          %v336 = vld [vmem:[%s284 + $0xc0] sm:$0xff]
          %v337 = vld [vmem:[%s284 + $0xc8] sm:$0xff]
          %v338 = vld [vmem:[%s284 + $0xd0] sm:$0xff]
          %v339 = vld [vmem:[%s284 + $0xd8] sm:$0xff]
          %v340 = vld [vmem:[%s284 + $0xe0] sm:$0xff]
          %v341 = vld [vmem:[%s284 + $0xe8] sm:$0xff]
          %v342 = vld [vmem:[%s284 + $0xf0] sm:$0xff]
          %v343 = vld [vmem:[%s284 + $0xf8] sm:$0xff]
          %v344 = vpack.c.bf16 %v313, %v312
          %v345 = vpack.c.bf16 %v315, %v314
          %v346 = vpack.c.bf16 %v317, %v316
          %v347 = vpack.c.bf16 %v319, %v318
          %v348 = vpack.c.bf16 %v321, %v320
          %v349 = vpack.c.bf16 %v323, %v322
          %v350 = vpack.c.bf16 %v325, %v324
          %v351 = vpack.c.bf16 %v327, %v326
          %v352 = vpack.c.bf16 %v329, %v328
          %v353 = vpack.c.bf16 %v331, %v330
          %v354 = vpack.c.bf16 %v333, %v332
          %v355 = vpack.c.bf16 %v335, %v334
          %v356 = vpack.c.bf16 %v337, %v336
          %v357 = vpack.c.bf16 %v339, %v338
          %v358 = vpack.c.bf16 %v341, %v340
          %v359 = vpack.c.bf16 %v343, %v342
          %vm360 = vcmask 31744
          %361 = vst.msk [vmem:[#allocation2] sm:$0xff] %vm360, %v344
          %362 = vst.msk [vmem:[#allocation2 + $0x8] sm:$0xff] %vm360, %v345
          %363 = vst.msk [vmem:[#allocation2 + $0x10] sm:$0xff] %vm360, %v346
          %364 = vst.msk [vmem:[#allocation2 + $0x18] sm:$0xff] %vm360, %v347
          %365 = vst.msk [vmem:[#allocation2 + $0x20] sm:$0xff] %vm360, %v348
          %366 = vst.msk [vmem:[#allocation2 + $0x28] sm:$0xff] %vm360, %v349
          %367 = vst.msk [vmem:[#allocation2 + $0x30] sm:$0xff] %vm360, %v350
          %368 = vst.msk [vmem:[#allocation2 + $0x38] sm:$0xff] %vm360, %v351
          %369 = vst.msk [vmem:[#allocation2 + $0x40] sm:$0xff] %vm360, %v352
          %370 = vst.msk [vmem:[#allocation2 + $0x48] sm:$0xff] %vm360, %v353
          %371 = vst.msk [vmem:[#allocation2 + $0x50] sm:$0xff] %vm360, %v354
          %372 = vst.msk [vmem:[#allocation2 + $0x58] sm:$0xff] %vm360, %v355
          %373 = vst.msk [vmem:[#allocation2 + $0x60] sm:$0xff] %vm360, %v356
          %374 = vst.msk [vmem:[#allocation2 + $0x68] sm:$0xff] %vm360, %v357
          %375 = vst.msk [vmem:[#allocation2 + $0x70] sm:$0xff] %vm360, %v358
          %376 = vst.msk [vmem:[#allocation2 + $0x78] sm:$0xff] %vm360, %v359
        $region48: #{tpu_custom_call.1} parent=39 // pred_fallthru
          _
        %v377 = vld [vmem:[#allocation2] sm:$0xff]
        %v378 = vld [vmem:[#allocation2 + $0x8] sm:$0xff]
        %v379 = vld [vmem:[#allocation2 + $0x10] sm:$0xff]
        %v380 = vld [vmem:[#allocation2 + $0x18] sm:$0xff]
        %v381 = vld [vmem:[#allocation2 + $0x20] sm:$0xff]
        %v382 = vld [vmem:[#allocation2 + $0x28] sm:$0xff]
        %v383 = vld [vmem:[#allocation2 + $0x30] sm:$0xff]
        %v384 = vld [vmem:[#allocation2 + $0x38] sm:$0xff]
        %v385 = vld [vmem:[#allocation2 + $0x40] sm:$0xff]
        %v386 = vld [vmem:[#allocation2 + $0x48] sm:$0xff]
        %v387 = vld [vmem:[#allocation2 + $0x50] sm:$0xff]
        %v388 = vld [vmem:[#allocation2 + $0x58] sm:$0xff]
        %v389 = vld [vmem:[#allocation2 + $0x60] sm:$0xff]
        %v390 = vld [vmem:[#allocation2 + $0x68] sm:$0xff]
        %v391 = vld [vmem:[#allocation2 + $0x70] sm:$0xff]
        %v392 = vld [vmem:[#allocation2 + $0x78] sm:$0xff]
        %v393 = vld [vmem:[%s247] sm:$0xff]
        %v394 = vld [vmem:[%s247 + $0x8] sm:$0xf]
        %v395 = vld [vmem:[%s247 + $0xc] sm:$0xff]
        %v396 = vld [vmem:[%s247 + $0x14] sm:$0xf]
        %v397 = vld [vmem:[%s247 + $0x18] sm:$0xff]
        %v398 = vld [vmem:[%s247 + $0x20] sm:$0xf]
        %v399 = vld [vmem:[%s247 + $0x24] sm:$0xff]
        %v400 = vld [vmem:[%s247 + $0x2c] sm:$0xf]
        %v401 = vld [vmem:[%s247 + $0x30] sm:$0xff]
        %v402 = vld [vmem:[%s247 + $0x38] sm:$0xf]
        %v403 = vld [vmem:[%s247 + $0x3c] sm:$0xff]
        %v404 = vld [vmem:[%s247 + $0x44] sm:$0xf]
        %v405 = vld [vmem:[%s247 + $0x48] sm:$0xff]
        %v406 = vld [vmem:[%s247 + $0x50] sm:$0xf]
        %v407 = vld [vmem:[%s247 + $0x54] sm:$0xff]
        %v408 = vld [vmem:[%s247 + $0x5c] sm:$0xf]
        %v409 = vld [vmem:[%s247 + $0x60] sm:$0xff]
        %v410 = vld [vmem:[%s247 + $0x68] sm:$0xf]
        %v411 = vld [vmem:[%s247 + $0x6c] sm:$0xff]
        %v412 = vld [vmem:[%s247 + $0x74] sm:$0xf]
        %v413 = vld [vmem:[%s247 + $0x78] sm:$0xff]
        %v414 = vld [vmem:[%s247 + $0x80] sm:$0xf]
        %v415 = vld [vmem:[%s247 + $0x84] sm:$0xff]
        %v416 = vld [vmem:[%s247 + $0x8c] sm:$0xf]
        %v417 = vld [vmem:[%s247 + $0x90] sm:$0xff]
        %v418 = vld [vmem:[%s247 + $0x98] sm:$0xf]
        %v419 = vld [vmem:[%s247 + $0x9c] sm:$0xff]
        %v420 = vld [vmem:[%s247 + $0xa4] sm:$0xf]
        %v421 = vld [vmem:[%s247 + $0xa8] sm:$0xff]
        %v422 = vld [vmem:[%s247 + $0xb0] sm:$0xf]
        %v423 = vld [vmem:[%s247 + $0xb4] sm:$0xff]
        %v424 = vld [vmem:[%s247 + $0xbc] sm:$0xf]
        %v457 = vunpack.c.l.b16 %v393
        %v458 = vunpack.c.h.b16 %v393
        %v459 = vunpack.c.l.b16 %v394
        %v460 = vunpack.c.l.b16 %v395
        %v461 = vunpack.c.h.b16 %v395
        %v462 = vunpack.c.l.b16 %v396
        %v463 = vunpack.c.l.b16 %v397
        %v464 = vunpack.c.h.b16 %v397
        %v465 = vunpack.c.l.b16 %v398
        %v466 = vunpack.c.l.b16 %v399
        %v467 = vunpack.c.h.b16 %v399
        %v468 = vunpack.c.l.b16 %v400
        %v469 = vunpack.c.l.b16 %v401
        %v470 = vunpack.c.h.b16 %v401
        %v471 = vunpack.c.l.b16 %v402
        %v472 = vunpack.c.l.b16 %v403
        %v473 = vunpack.c.h.b16 %v403
        %v474 = vunpack.c.l.b16 %v404
        %v475 = vunpack.c.l.b16 %v405
        %v476 = vunpack.c.h.b16 %v405
        %v477 = vunpack.c.l.b16 %v406
        %v478 = vunpack.c.l.b16 %v407
        %v479 = vunpack.c.h.b16 %v407
        %v480 = vunpack.c.l.b16 %v408
        %v481 = vunpack.c.l.b16 %v409
        %v482 = vunpack.c.h.b16 %v409
        %v483 = vunpack.c.l.b16 %v410
        %v484 = vunpack.c.l.b16 %v411
        %v485 = vunpack.c.h.b16 %v411
        %v486 = vunpack.c.l.b16 %v412
        %v487 = vunpack.c.l.b16 %v413
        %v488 = vunpack.c.h.b16 %v413
        %v489 = vunpack.c.l.b16 %v414
        %v490 = vunpack.c.l.b16 %v415
        %v491 = vunpack.c.h.b16 %v415
        %v492 = vunpack.c.l.b16 %v416
        %v493 = vunpack.c.l.b16 %v417
        %v494 = vunpack.c.h.b16 %v417
        %v495 = vunpack.c.l.b16 %v418
        %v496 = vunpack.c.l.b16 %v419
        %v497 = vunpack.c.h.b16 %v419
        %v498 = vunpack.c.l.b16 %v420
        %v499 = vunpack.c.l.b16 %v421
        %v500 = vunpack.c.h.b16 %v421
        %v501 = vunpack.c.l.b16 %v422
        %v502 = vunpack.c.l.b16 %v423
        %v503 = vunpack.c.h.b16 %v423
        %v504 = vunpack.c.l.b16 %v424
        %v505 = vpack.c.b16 %v460, %v457
        %v506 = vpack.c.b16 %v461, %v458
        %v507 = vpack.c.b16 %v462, %v459
        %v508 = vpack.c.b16 %v466, %v463
        %v509 = vpack.c.b16 %v467, %v464
        %v510 = vpack.c.b16 %v468, %v465
        %v511 = vpack.c.b16 %v472, %v469
        %v512 = vpack.c.b16 %v473, %v470
        %v513 = vpack.c.b16 %v474, %v471
        %v514 = vpack.c.b16 %v478, %v475
        %v515 = vpack.c.b16 %v479, %v476
        %v516 = vpack.c.b16 %v480, %v477
        %v517 = vpack.c.b16 %v484, %v481
        %v518 = vpack.c.b16 %v485, %v482
        %v519 = vpack.c.b16 %v486, %v483
        %v520 = vpack.c.b16 %v490, %v487
        %v521 = vpack.c.b16 %v491, %v488
        %v522 = vpack.c.b16 %v492, %v489
        %v523 = vpack.c.b16 %v496, %v493
        %v524 = vpack.c.b16 %v497, %v494
        %v525 = vpack.c.b16 %v498, %v495
        %v526 = vpack.c.b16 %v502, %v499
        %v527 = vpack.c.b16 %v503, %v500
        %v528 = vpack.c.b16 %v504, %v501
        %553 = vmatprep.subr.bf16.mxu0 %v506
        %554 = vmatpush1.bf16.msra.mxu0 %v505
        %555 = vmatprep.subr.bf16.mxu0 %v509
        %556 = vmatpush1.bf16.msra.mxu0 %v508
        %557 = vmatprep.subr.bf16.mxu0 %v512
        %558 = vmatpush1.bf16.msra.mxu0 %v511
        %559 = vmatprep.subr.bf16.mxu0 %v515
        %560 = vmatpush1.bf16.msra.mxu0 %v514
        %561 = vmatprep.subr.bf16.mxu0 %v518
        %562 = vmatpush1.bf16.msra.mxu0 %v517
        %563 = vmatprep.subr.bf16.mxu0 %v521
        %564 = vmatpush1.bf16.msra.mxu0 %v520
        %565 = vmatprep.subr.bf16.mxu0 %v524
        %566 = vmatpush1.bf16.msra.mxu0 %v523
        %567 = vmatprep.subr.bf16.mxu0 %v527
        %568 = vmatpush1.bf16.msra.mxu0 %v526
        %569 = vmatprep.subr.bf16.mxu0 0
        %570 = vmatpush1.bf16.msra.mxu0 0
        %571 = vmatprep.subr.bf16.mxu0 0
        %572 = vmatpush1.bf16.msra.mxu0 0
        %573 = vmatprep.subr.bf16.mxu0 0
        %574 = vmatpush1.bf16.msra.mxu0 0
        %575 = vmatprep.subr.bf16.mxu0 0
        %576 = vmatpush1.bf16.msra.mxu0 0
        %577 = vmatprep.subr.bf16.mxu0 0
        %578 = vmatpush1.bf16.msra.mxu0 0
        %579 = vmatprep.subr.bf16.mxu0 0
        %580 = vmatpush1.bf16.msra.mxu0 0
        %581 = vmatprep.subr.bf16.mxu0 0
        %582 = vmatpush1.bf16.msra.mxu0 0
        %583 = vmatprep.subr.bf16.mxu0 0
        %584 = vmatpush1.bf16.msra.mxu0 0
        %585 = vmatprep.mubr.bf16.mxu0 0
        %586 = vmatmul.mubr.bf16.gmra.mrb[0].mxu0 %v377
        %v587 = vpop.f32.mrb[0].mxu0
        %v588 = vadd.f32 0.0, %v587
        %v589 = vpop.f32.mrb[0].mxu0
        %v590 = vadd.f32 0.0, %v589
        %v591 = vpop.f32.mrb[0].mxu0
        %v592 = vadd.f32 0.0, %v591
        %v593 = vpop.f32.mrb[0].mxu0
        %v594 = vadd.f32 0.0, %v593
        %595 = vmatprep.mubr.bf16.mxu0 0
        %596 = vmatmul.mubr.bf16.gmra.mrb[0].mxu0 %v378
        %v597 = vpop.f32.mrb[0].mxu0
        %v598 = vadd.f32 0.0, %v597
        %v599 = vpop.f32.mrb[0].mxu0
        %v600 = vadd.f32 0.0, %v599
        %v601 = vpop.f32.mrb[0].mxu0
        %v602 = vadd.f32 0.0, %v601
        %v603 = vpop.f32.mrb[0].mxu0
        %v604 = vadd.f32 0.0, %v603
        %605 = vmatprep.mubr.bf16.mxu0 0
        %606 = vmatmul.mubr.bf16.gmra.mrb[0].mxu0 %v379
        %v607 = vpop.f32.mrb[0].mxu0
        %v608 = vadd.f32 0.0, %v607
        %v609 = vpop.f32.mrb[0].mxu0
        %v610 = vadd.f32 0.0, %v609
        %v611 = vpop.f32.mrb[0].mxu0
        %v612 = vadd.f32 0.0, %v611
        %v613 = vpop.f32.mrb[0].mxu0
        %v614 = vadd.f32 0.0, %v613
        %615 = vmatprep.mubr.bf16.mxu0 0
        %616 = vmatmul.mubr.bf16.gmra.mrb[0].mxu0 %v380
        %v617 = vpop.f32.mrb[0].mxu0
        %v618 = vadd.f32 0.0, %v617
        %v619 = vpop.f32.mrb[0].mxu0
        %v620 = vadd.f32 0.0, %v619
        %v621 = vpop.f32.mrb[0].mxu0
        %v622 = vadd.f32 0.0, %v621
        %v623 = vpop.f32.mrb[0].mxu0
        %v624 = vadd.f32 0.0, %v623
        %625 = vmatprep.mubr.bf16.mxu0 0
        %626 = vmatmul.mubr.bf16.gmra.mrb[0].mxu0 %v381
        %v627 = vpop.f32.mrb[0].mxu0
        %v628 = vadd.f32 0.0, %v627
        %v629 = vpop.f32.mrb[0].mxu0
        %v630 = vadd.f32 0.0, %v629
        %v631 = vpop.f32.mrb[0].mxu0
        %v632 = vadd.f32 0.0, %v631
        %v633 = vpop.f32.mrb[0].mxu0
        %v634 = vadd.f32 0.0, %v633
        %635 = vmatprep.mubr.bf16.mxu0 0
        %636 = vmatmul.mubr.bf16.gmra.mrb[0].mxu0 %v382
        %v637 = vpop.f32.mrb[0].mxu0
        %v638 = vadd.f32 0.0, %v637
        %v639 = vpop.f32.mrb[0].mxu0
        %v640 = vadd.f32 0.0, %v639
        %v641 = vpop.f32.mrb[0].mxu0
        %v642 = vadd.f32 0.0, %v641
        %v643 = vpop.f32.mrb[0].mxu0
        %v644 = vadd.f32 0.0, %v643
        %645 = vmatprep.mubr.bf16.mxu0 0
        %646 = vmatmul.mubr.bf16.gmra.mrb[0].mxu0 %v383
        %v647 = vpop.f32.mrb[0].mxu0
        %v648 = vadd.f32 0.0, %v647
        %v649 = vpop.f32.mrb[0].mxu0
        %v650 = vadd.f32 0.0, %v649
        %v651 = vpop.f32.mrb[0].mxu0
        %v652 = vadd.f32 0.0, %v651
        %v653 = vpop.f32.mrb[0].mxu0
        %v654 = vadd.f32 0.0, %v653
        %655 = vmatprep.mubr.bf16.mxu0 0
        %656 = vmatmul.mubr.bf16.gmra.mrb[0].mxu0 %v384
        %v657 = vpop.f32.mrb[0].mxu0
        %v658 = vadd.f32 0.0, %v657
        %v659 = vpop.f32.mrb[0].mxu0
        %v660 = vadd.f32 0.0, %v659
        %v661 = vpop.f32.mrb[0].mxu0
        %v662 = vadd.f32 0.0, %v661
        %v663 = vpop.f32.mrb[0].mxu0
        %v664 = vadd.f32 0.0, %v663
        %665 = vmatprep.mubr.bf16.mxu0 0
        %666 = vmatmul.mubr.bf16.gmra.mrb[0].mxu0 %v385
        %v667 = vpop.f32.mrb[0].mxu0
        %v668 = vadd.f32 0.0, %v667
        %v669 = vpop.f32.mrb[0].mxu0
        %v670 = vadd.f32 0.0, %v669
        %v671 = vpop.f32.mrb[0].mxu0
        %v672 = vadd.f32 0.0, %v671
        %v673 = vpop.f32.mrb[0].mxu0
        %v674 = vadd.f32 0.0, %v673
        %675 = vmatprep.mubr.bf16.mxu0 0
        %676 = vmatmul.mubr.bf16.gmra.mrb[0].mxu0 %v386
        %v677 = vpop.f32.mrb[0].mxu0
        %v678 = vadd.f32 0.0, %v677
        %v679 = vpop.f32.mrb[0].mxu0
        %v680 = vadd.f32 0.0, %v679
        %v681 = vpop.f32.mrb[0].mxu0
        %v682 = vadd.f32 0.0, %v681
        %v683 = vpop.f32.mrb[0].mxu0
        %v684 = vadd.f32 0.0, %v683
        %685 = vmatprep.mubr.bf16.mxu0 0
        %686 = vmatmul.mubr.bf16.gmra.mrb[0].mxu0 %v387
        %v687 = vpop.f32.mrb[0].mxu0
        %v688 = vadd.f32 0.0, %v687
        %v689 = vpop.f32.mrb[0].mxu0
        %v690 = vadd.f32 0.0, %v689
        %v691 = vpop.f32.mrb[0].mxu0
        %v692 = vadd.f32 0.0, %v691
        %v693 = vpop.f32.mrb[0].mxu0
        %v694 = vadd.f32 0.0, %v693
        %695 = vmatprep.mubr.bf16.mxu0 0
        %696 = vmatmul.mubr.bf16.gmra.mrb[0].mxu0 %v388
        %v697 = vpop.f32.mrb[0].mxu0
        %v698 = vadd.f32 0.0, %v697
        %v699 = vpop.f32.mrb[0].mxu0
        %v700 = vadd.f32 0.0, %v699
        %v701 = vpop.f32.mrb[0].mxu0
        %v702 = vadd.f32 0.0, %v701
        %v703 = vpop.f32.mrb[0].mxu0
        %v704 = vadd.f32 0.0, %v703
        %705 = vmatprep.mubr.bf16.mxu0 0
        %706 = vmatmul.mubr.bf16.gmra.mrb[0].mxu0 %v389
        %v707 = vpop.f32.mrb[0].mxu0
        %v708 = vadd.f32 0.0, %v707
        %v709 = vpop.f32.mrb[0].mxu0
        %v710 = vadd.f32 0.0, %v709
        %v711 = vpop.f32.mrb[0].mxu0
        %v712 = vadd.f32 0.0, %v711
        %v713 = vpop.f32.mrb[0].mxu0
        %v714 = vadd.f32 0.0, %v713
        %715 = vmatprep.mubr.bf16.mxu0 0
        %716 = vmatmul.mubr.bf16.gmra.mrb[0].mxu0 %v390
        %v717 = vpop.f32.mrb[0].mxu0
        %v718 = vadd.f32 0.0, %v717
        %v719 = vpop.f32.mrb[0].mxu0
        %v720 = vadd.f32 0.0, %v719
        %v721 = vpop.f32.mrb[0].mxu0
        %v722 = vadd.f32 0.0, %v721
        %v723 = vpop.f32.mrb[0].mxu0
        %v724 = vadd.f32 0.0, %v723
        %725 = vmatprep.mubr.bf16.mxu0 0
        %726 = vmatmul.mubr.bf16.gmra.mrb[0].mxu0 %v391
        %v727 = vpop.f32.mrb[0].mxu0
        %v728 = vadd.f32 0.0, %v727
        %v729 = vpop.f32.mrb[0].mxu0
        %v730 = vadd.f32 0.0, %v729
        %v731 = vpop.f32.mrb[0].mxu0
        %v732 = vadd.f32 0.0, %v731
        %v733 = vpop.f32.mrb[0].mxu0
        %v734 = vadd.f32 0.0, %v733
        %735 = vmatprep.mubr.bf16.mxu0 0
        %736 = vmatmul.mubr.bf16.gmra.mrb[0].mxu0 %v392
        %v737 = vpop.f32.mrb[0].mxu0
        %v738 = vadd.f32 0.0, %v737
        %v739 = vpop.f32.mrb[0].mxu0
        %v740 = vadd.f32 0.0, %v739
        %v741 = vpop.f32.mrb[0].mxu0
        %v742 = vadd.f32 0.0, %v741
        %v743 = vpop.f32.mrb[0].mxu0
        %v744 = vadd.f32 0.0, %v743
        %745 = vdwg.mxu0
        %746 = vmatprep.subr.bf16.mxu0 0
        %747 = vmatpush1.bf16.msra.mxu0 %v507
        %748 = vmatprep.subr.bf16.mxu0 0
        %749 = vmatpush1.bf16.msra.mxu0 %v510
        %750 = vmatprep.subr.bf16.mxu0 0
        %751 = vmatpush1.bf16.msra.mxu0 %v513
        %752 = vmatprep.subr.bf16.mxu0 0
        %753 = vmatpush1.bf16.msra.mxu0 %v516
        %754 = vmatprep.subr.bf16.mxu0 0
        %755 = vmatpush1.bf16.msra.mxu0 %v519
        %756 = vmatprep.subr.bf16.mxu0 0
        %757 = vmatpush1.bf16.msra.mxu0 %v522
        %758 = vmatprep.subr.bf16.mxu0 0
        %759 = vmatpush1.bf16.msra.mxu0 %v525
        %760 = vmatprep.subr.bf16.mxu0 0
        %761 = vmatpush1.bf16.msra.mxu0 %v528
        %762 = vmatprep.subr.bf16.mxu0 0
        %763 = vmatpush1.bf16.msra.mxu0 0
        %764 = vmatprep.subr.bf16.mxu0 0
        %765 = vmatpush1.bf16.msra.mxu0 0
        %766 = vmatprep.subr.bf16.mxu0 0
        %767 = vmatpush1.bf16.msra.mxu0 0
        %768 = vmatprep.subr.bf16.mxu0 0
        %769 = vmatpush1.bf16.msra.mxu0 0
        %770 = vmatprep.subr.bf16.mxu0 0
        %771 = vmatpush1.bf16.msra.mxu0 0
        %772 = vmatprep.subr.bf16.mxu0 0
        %773 = vmatpush1.bf16.msra.mxu0 0
        %774 = vmatprep.subr.bf16.mxu0 0
        %775 = vmatpush1.bf16.msra.mxu0 0
        %776 = vmatprep.subr.bf16.mxu0 0
        %777 = vmatpush1.bf16.msra.mxu0 0
        %778 = vmatprep.mubr.bf16.mxu0 0
        %779 = vmatmul.mubr.bf16.gmra.mrb[0].mxu0 %v377
        %v780 = vpop.f32.mrb[0].mxu0
        %v781 = vadd.f32 0.0, %v780
        %v782 = vpop.f32.mrb[0].mxu0
        %v783 = vpop.f32.mrb[0].mxu0
        %v784 = vadd.f32 0.0, %v783
        %v785 = vpop.f32.mrb[0].mxu0
        %786 = vmatprep.mubr.bf16.mxu0 0
        %787 = vmatmul.mubr.bf16.gmra.mrb[0].mxu0 %v378
        %v788 = vpop.f32.mrb[0].mxu0
        %v789 = vadd.f32 0.0, %v788
        %v790 = vpop.f32.mrb[0].mxu0
        %v791 = vpop.f32.mrb[0].mxu0
        %v792 = vadd.f32 0.0, %v791
        %v793 = vpop.f32.mrb[0].mxu0
        %794 = vmatprep.mubr.bf16.mxu0 0
        %795 = vmatmul.mubr.bf16.gmra.mrb[0].mxu0 %v379
        %v796 = vpop.f32.mrb[0].mxu0
        %v797 = vadd.f32 0.0, %v796
        %v798 = vpop.f32.mrb[0].mxu0
        %v799 = vpop.f32.mrb[0].mxu0
        %v800 = vadd.f32 0.0, %v799
        %v801 = vpop.f32.mrb[0].mxu0
        %802 = vmatprep.mubr.bf16.mxu0 0
        %803 = vmatmul.mubr.bf16.gmra.mrb[0].mxu0 %v380
        %v804 = vpop.f32.mrb[0].mxu0
        %v805 = vadd.f32 0.0, %v804
        %v806 = vpop.f32.mrb[0].mxu0
        %v807 = vpop.f32.mrb[0].mxu0
        %v808 = vadd.f32 0.0, %v807
        %v809 = vpop.f32.mrb[0].mxu0
        %810 = vmatprep.mubr.bf16.mxu0 0
        %811 = vmatmul.mubr.bf16.gmra.mrb[0].mxu0 %v381
        %v812 = vpop.f32.mrb[0].mxu0
        %v813 = vadd.f32 0.0, %v812
        %v814 = vpop.f32.mrb[0].mxu0
        %v815 = vpop.f32.mrb[0].mxu0
        %v816 = vadd.f32 0.0, %v815
        %v817 = vpop.f32.mrb[0].mxu0
        %818 = vmatprep.mubr.bf16.mxu0 0
        %819 = vmatmul.mubr.bf16.gmra.mrb[0].mxu0 %v382
        %v820 = vpop.f32.mrb[0].mxu0
        %v821 = vadd.f32 0.0, %v820
        %v822 = vpop.f32.mrb[0].mxu0
        %v823 = vpop.f32.mrb[0].mxu0
        %v824 = vadd.f32 0.0, %v823
        %v825 = vpop.f32.mrb[0].mxu0
        %826 = vmatprep.mubr.bf16.mxu0 0
        %827 = vmatmul.mubr.bf16.gmra.mrb[0].mxu0 %v383
        %v828 = vpop.f32.mrb[0].mxu0
        %v829 = vadd.f32 0.0, %v828
        %v830 = vpop.f32.mrb[0].mxu0
        %v831 = vpop.f32.mrb[0].mxu0
        %v832 = vadd.f32 0.0, %v831
        %v833 = vpop.f32.mrb[0].mxu0
        %834 = vmatprep.mubr.bf16.mxu0 0
        %835 = vmatmul.mubr.bf16.gmra.mrb[0].mxu0 %v384
        %v836 = vpop.f32.mrb[0].mxu0
        %v837 = vadd.f32 0.0, %v836
        %v838 = vpop.f32.mrb[0].mxu0
        %v839 = vpop.f32.mrb[0].mxu0
        %v840 = vadd.f32 0.0, %v839
        %v841 = vpop.f32.mrb[0].mxu0
        %842 = vmatprep.mubr.bf16.mxu0 0
        %843 = vmatmul.mubr.bf16.gmra.mrb[0].mxu0 %v385
        %v844 = vpop.f32.mrb[0].mxu0
        %v845 = vadd.f32 0.0, %v844
        %v846 = vpop.f32.mrb[0].mxu0
        %v847 = vpop.f32.mrb[0].mxu0
        %v848 = vadd.f32 0.0, %v847
        %v849 = vpop.f32.mrb[0].mxu0
        %850 = vmatprep.mubr.bf16.mxu0 0
        %851 = vmatmul.mubr.bf16.gmra.mrb[0].mxu0 %v386
        %v852 = vpop.f32.mrb[0].mxu0
        %v853 = vadd.f32 0.0, %v852
        %v854 = vpop.f32.mrb[0].mxu0
        %v855 = vpop.f32.mrb[0].mxu0
        %v856 = vadd.f32 0.0, %v855
        %v857 = vpop.f32.mrb[0].mxu0
        %858 = vmatprep.mubr.bf16.mxu0 0
        %859 = vmatmul.mubr.bf16.gmra.mrb[0].mxu0 %v387
        %v860 = vpop.f32.mrb[0].mxu0
        %v861 = vadd.f32 0.0, %v860
        %v862 = vpop.f32.mrb[0].mxu0
        %v863 = vpop.f32.mrb[0].mxu0
        %v864 = vadd.f32 0.0, %v863
        %v865 = vpop.f32.mrb[0].mxu0
        %866 = vmatprep.mubr.bf16.mxu0 0
        %867 = vmatmul.mubr.bf16.gmra.mrb[0].mxu0 %v388
        %v868 = vpop.f32.mrb[0].mxu0
        %v869 = vadd.f32 0.0, %v868
        %v870 = vpop.f32.mrb[0].mxu0
        %v871 = vpop.f32.mrb[0].mxu0
        %v872 = vadd.f32 0.0, %v871
        %v873 = vpop.f32.mrb[0].mxu0
        %874 = vmatprep.mubr.bf16.mxu0 0
        %875 = vmatmul.mubr.bf16.gmra.mrb[0].mxu0 %v389
        %v876 = vpop.f32.mrb[0].mxu0
        %v877 = vadd.f32 0.0, %v876
        %v878 = vpop.f32.mrb[0].mxu0
        %v879 = vpop.f32.mrb[0].mxu0
        %v880 = vadd.f32 0.0, %v879
        %v881 = vpop.f32.mrb[0].mxu0
        %882 = vmatprep.mubr.bf16.mxu0 0
        %883 = vmatmul.mubr.bf16.gmra.mrb[0].mxu0 %v390
        %v884 = vpop.f32.mrb[0].mxu0
        %v885 = vadd.f32 0.0, %v884
        %v886 = vpop.f32.mrb[0].mxu0
        %v887 = vpop.f32.mrb[0].mxu0
        %v888 = vadd.f32 0.0, %v887
        %v889 = vpop.f32.mrb[0].mxu0
        %890 = vmatprep.mubr.bf16.mxu0 0
        %891 = vmatmul.mubr.bf16.gmra.mrb[0].mxu0 %v391
        %v892 = vpop.f32.mrb[0].mxu0
        %v893 = vadd.f32 0.0, %v892
        %v894 = vpop.f32.mrb[0].mxu0
        %v895 = vpop.f32.mrb[0].mxu0
        %v896 = vadd.f32 0.0, %v895
        %v897 = vpop.f32.mrb[0].mxu0
        %898 = vmatprep.mubr.bf16.mxu0 0
        %899 = vmatmul.mubr.bf16.gmra.mrb[0].mxu0 %v392
        %v900 = vpop.f32.mrb[0].mxu0
        %v901 = vadd.f32 0.0, %v900
        %v902 = vpop.f32.mrb[0].mxu0
        %v903 = vpop.f32.mrb[0].mxu0
        %v904 = vadd.f32 0.0, %v903
        %v905 = vpop.f32.mrb[0].mxu0
        %906 = vdwg.mxu0
        %v907 = vlaneseq
        %v908 = vshrl.u32 %v907, 7
        %v909 = vadd.s32 %v908, 8
        %vm910 = vcmp.gt.s32.totalorder %v908, 0
        %vm911 = vcmp.gt.s32.totalorder %v909, 0
        %v912 = vrot.slane %v588, 7
        %v913 = vrot.slane %v592, 7
        %v914 = vrot.slane %v598, 7
        %v915 = vrot.slane %v602, 7
        %v916 = vrot.slane %v608, 7
        %v917 = vrot.slane %v612, 7
        %v918 = vrot.slane %v618, 7
        %v919 = vrot.slane %v622, 7
        %v920 = vrot.slane %v628, 7
        %v921 = vrot.slane %v632, 7
        %v922 = vrot.slane %v638, 7
        %v923 = vrot.slane %v642, 7
        %v924 = vrot.slane %v648, 7
        %v925 = vrot.slane %v652, 7
        %v926 = vrot.slane %v658, 7
        %v927 = vrot.slane %v662, 7
        %v928 = vrot.slane %v668, 7
        %v929 = vrot.slane %v672, 7
        %v930 = vrot.slane %v678, 7
        %v931 = vrot.slane %v682, 7
        %v932 = vrot.slane %v688, 7
        %v933 = vrot.slane %v692, 7
        %v934 = vrot.slane %v698, 7
        %v935 = vrot.slane %v702, 7
        %v936 = vrot.slane %v708, 7
        %v937 = vrot.slane %v712, 7
        %v938 = vrot.slane %v718, 7
        %v939 = vrot.slane %v722, 7
        %v940 = vrot.slane %v728, 7
        %v941 = vrot.slane %v732, 7
        %v942 = vrot.slane %v738, 7
        %v943 = vrot.slane %v742, 7
        %vm944 = vcmp.lt.s32.totalorder %v908, 1
        %v945 = vsel %vm944, %v942, %v943
        %v946 = vsel %vm944, %v941, %v942
        %v947 = vsel %vm944, %v940, %v941
        %v948 = vsel %vm944, %v939, %v940
        %v949 = vsel %vm944, %v938, %v939
        %v950 = vsel %vm944, %v937, %v938
        %v951 = vsel %vm944, %v936, %v937
        %v952 = vsel %vm944, %v935, %v936
        %v953 = vsel %vm944, %v934, %v935
        %v954 = vsel %vm944, %v933, %v934
        %v955 = vsel %vm944, %v932, %v933
        %v956 = vsel %vm944, %v931, %v932
        %v957 = vsel %vm944, %v930, %v931
        %v958 = vsel %vm944, %v929, %v930
        %v959 = vsel %vm944, %v928, %v929
        %v960 = vsel %vm944, %v927, %v928
        %v961 = vsel %vm944, %v926, %v927
        %v962 = vsel %vm944, %v925, %v926
        %v963 = vsel %vm944, %v924, %v925
        %v964 = vsel %vm944, %v923, %v924
        %v965 = vsel %vm944, %v922, %v923
        %v966 = vsel %vm944, %v921, %v922
        %v967 = vsel %vm944, %v920, %v921
        %v968 = vsel %vm944, %v919, %v920
        %v969 = vsel %vm944, %v918, %v919
        %v970 = vsel %vm944, %v917, %v918
        %v971 = vsel %vm944, %v916, %v917
        %v972 = vsel %vm944, %v915, %v916
        %v973 = vsel %vm944, %v914, %v915
        %v974 = vsel %vm944, %v913, %v914
        %v975 = vsel %vm944, %v912, %v913
        %v976 = vsel %vm944, %v943, %v912
        %v977 = vsel %vm910, %v976, 0.0
        %v978 = vsel %vm911, %v975, 0.0
        %v979 = vsel %vm910, %v974, 0.0
        %v980 = vsel %vm911, %v973, 0.0
        %v981 = vsel %vm910, %v972, 0.0
        %v982 = vsel %vm911, %v971, 0.0
        %v983 = vsel %vm910, %v970, 0.0
        %v984 = vsel %vm911, %v969, 0.0
        %v985 = vsel %vm910, %v968, 0.0
        %v986 = vsel %vm911, %v967, 0.0
        %v987 = vsel %vm910, %v966, 0.0
        %v988 = vsel %vm911, %v965, 0.0
        %v989 = vsel %vm910, %v964, 0.0
        %v990 = vsel %vm911, %v963, 0.0
        %v991 = vsel %vm910, %v962, 0.0
        %v992 = vsel %vm911, %v961, 0.0
        %v993 = vsel %vm910, %v960, 0.0
        %v994 = vsel %vm911, %v959, 0.0
        %v995 = vsel %vm910, %v958, 0.0
        %v996 = vsel %vm911, %v957, 0.0
        %v997 = vsel %vm910, %v956, 0.0
        %v998 = vsel %vm911, %v955, 0.0
        %v999 = vsel %vm910, %v954, 0.0
        %v1000 = vsel %vm911, %v953, 0.0
        %v1001 = vsel %vm910, %v952, 0.0
        %v1002 = vsel %vm911, %v951, 0.0
        %v1003 = vsel %vm910, %v950, 0.0
        %v1004 = vsel %vm911, %v949, 0.0
        %v1005 = vsel %vm910, %v948, 0.0
        %v1006 = vsel %vm911, %v947, 0.0
        %v1007 = vsel %vm910, %v946, 0.0
        %v1008 = vsel %vm911, %v945, 0.0
        %v1009 = vadd.f32 %v590, %v977
        %v1010 = vadd.f32 %v594, %v978
        %v1011 = vadd.f32 %v600, %v979
        %v1012 = vadd.f32 %v604, %v980
        %v1013 = vadd.f32 %v610, %v981
        %v1014 = vadd.f32 %v614, %v982
        %v1015 = vadd.f32 %v620, %v983
        %v1016 = vadd.f32 %v624, %v984
        %v1017 = vadd.f32 %v630, %v985
        %v1018 = vadd.f32 %v634, %v986
        %v1019 = vadd.f32 %v640, %v987
        %v1020 = vadd.f32 %v644, %v988
        %v1021 = vadd.f32 %v650, %v989
        %v1022 = vadd.f32 %v654, %v990
        %v1023 = vadd.f32 %v660, %v991
        %v1024 = vadd.f32 %v664, %v992
        %v1025 = vadd.f32 %v670, %v993
        %v1026 = vadd.f32 %v674, %v994
        %v1027 = vadd.f32 %v680, %v995
        %v1028 = vadd.f32 %v684, %v996
        %v1029 = vadd.f32 %v690, %v997
        %v1030 = vadd.f32 %v694, %v998
        %v1031 = vadd.f32 %v700, %v999
        %v1032 = vadd.f32 %v704, %v1000
        %v1033 = vadd.f32 %v710, %v1001
        %v1034 = vadd.f32 %v714, %v1002
        %v1035 = vadd.f32 %v720, %v1003
        %v1036 = vadd.f32 %v724, %v1004
        %v1037 = vadd.f32 %v730, %v1005
        %v1038 = vadd.f32 %v734, %v1006
        %v1039 = vadd.f32 %v740, %v1007
        %v1040 = vadd.f32 %v744, %v1008
        %vm1041 = vcmp.lt.s32.totalorder %v908, 15
        %vm1042 = vcmp.lt.s32.totalorder %v909, 15
        %v1043 = vrot.slane %v781, 1
        %v1044 = vrot.slane %v784, 1
        %v1045 = vrot.slane %v789, 1
        %v1046 = vrot.slane %v792, 1
        %v1047 = vrot.slane %v797, 1
        %v1048 = vrot.slane %v800, 1
        %v1049 = vrot.slane %v805, 1
        %v1050 = vrot.slane %v808, 1
        %v1051 = vrot.slane %v813, 1
        %v1052 = vrot.slane %v816, 1
        %v1053 = vrot.slane %v821, 1
        %v1054 = vrot.slane %v824, 1
        %v1055 = vrot.slane %v829, 1
        %v1056 = vrot.slane %v832, 1
        %v1057 = vrot.slane %v837, 1
        %v1058 = vrot.slane %v840, 1
        %v1059 = vrot.slane %v845, 1
        %v1060 = vrot.slane %v848, 1
        %v1061 = vrot.slane %v853, 1
        %v1062 = vrot.slane %v856, 1
        %v1063 = vrot.slane %v861, 1
        %v1064 = vrot.slane %v864, 1
        %v1065 = vrot.slane %v869, 1
        %v1066 = vrot.slane %v872, 1
        %v1067 = vrot.slane %v877, 1
        %v1068 = vrot.slane %v880, 1
        %v1069 = vrot.slane %v885, 1
        %v1070 = vrot.slane %v888, 1
        %v1071 = vrot.slane %v893, 1
        %v1072 = vrot.slane %v896, 1
        %v1073 = vrot.slane %v901, 1
        %v1074 = vrot.slane %v904, 1
        %vm1075 = vcmp.lt.s32.totalorder %v908, 7
        %v1076 = vsel %vm1075, %v1073, %v1074
        %v1077 = vsel %vm1075, %v1072, %v1073
        %v1078 = vsel %vm1075, %v1071, %v1072
        %v1079 = vsel %vm1075, %v1070, %v1071
        %v1080 = vsel %vm1075, %v1069, %v1070
        %v1081 = vsel %vm1075, %v1068, %v1069
        %v1082 = vsel %vm1075, %v1067, %v1068
        %v1083 = vsel %vm1075, %v1066, %v1067
        %v1084 = vsel %vm1075, %v1065, %v1066
        %v1085 = vsel %vm1075, %v1064, %v1065
        %v1086 = vsel %vm1075, %v1063, %v1064
        %v1087 = vsel %vm1075, %v1062, %v1063
        %v1088 = vsel %vm1075, %v1061, %v1062
        %v1089 = vsel %vm1075, %v1060, %v1061
        %v1090 = vsel %vm1075, %v1059, %v1060
        %v1091 = vsel %vm1075, %v1058, %v1059
        %v1092 = vsel %vm1075, %v1057, %v1058
        %v1093 = vsel %vm1075, %v1056, %v1057
        %v1094 = vsel %vm1075, %v1055, %v1056
        %v1095 = vsel %vm1075, %v1054, %v1055
        %v1096 = vsel %vm1075, %v1053, %v1054
        %v1097 = vsel %vm1075, %v1052, %v1053
        %v1098 = vsel %vm1075, %v1051, %v1052
        %v1099 = vsel %vm1075, %v1050, %v1051
        %v1100 = vsel %vm1075, %v1049, %v1050
        %v1101 = vsel %vm1075, %v1048, %v1049
        %v1102 = vsel %vm1075, %v1047, %v1048
        %v1103 = vsel %vm1075, %v1046, %v1047
        %v1104 = vsel %vm1075, %v1045, %v1046
        %v1105 = vsel %vm1075, %v1044, %v1045
        %v1106 = vsel %vm1075, %v1043, %v1044
        %v1107 = vsel %vm1075, %v1074, %v1043
        %v1108 = vsel %vm1041, %v1106, 0.0
        %v1109 = vsel %vm1042, %v1105, 0.0
        %v1110 = vsel %vm1041, %v1104, 0.0
        %v1111 = vsel %vm1042, %v1103, 0.0
        %v1112 = vsel %vm1041, %v1102, 0.0
        %v1113 = vsel %vm1042, %v1101, 0.0
        %v1114 = vsel %vm1041, %v1100, 0.0
        %v1115 = vsel %vm1042, %v1099, 0.0
        %v1116 = vsel %vm1041, %v1098, 0.0
        %v1117 = vsel %vm1042, %v1097, 0.0
        %v1118 = vsel %vm1041, %v1096, 0.0
        %v1119 = vsel %vm1042, %v1095, 0.0
        %v1120 = vsel %vm1041, %v1094, 0.0
        %v1121 = vsel %vm1042, %v1093, 0.0
        %v1122 = vsel %vm1041, %v1092, 0.0
        %v1123 = vsel %vm1042, %v1091, 0.0
        %v1124 = vsel %vm1041, %v1090, 0.0
        %v1125 = vsel %vm1042, %v1089, 0.0
        %v1126 = vsel %vm1041, %v1088, 0.0
        %v1127 = vsel %vm1042, %v1087, 0.0
        %v1128 = vsel %vm1041, %v1086, 0.0
        %v1129 = vsel %vm1042, %v1085, 0.0
        %v1130 = vsel %vm1041, %v1084, 0.0
        %v1131 = vsel %vm1042, %v1083, 0.0
        %v1132 = vsel %vm1041, %v1082, 0.0
        %v1133 = vsel %vm1042, %v1081, 0.0
        %v1134 = vsel %vm1041, %v1080, 0.0
        %v1135 = vsel %vm1042, %v1079, 0.0
        %v1136 = vsel %vm1041, %v1078, 0.0
        %v1137 = vsel %vm1042, %v1077, 0.0
        %v1138 = vsel %vm1041, %v1076, 0.0
        %v1139 = vsel %vm1042, %v1107, 0.0
        %v1140 = vadd.f32 %v1009, %v1108
        %v1141 = vadd.f32 %v1010, %v1109
        %v1142 = vadd.f32 %v1011, %v1110
        %v1143 = vadd.f32 %v1012, %v1111
        %v1144 = vadd.f32 %v1013, %v1112
        %v1145 = vadd.f32 %v1014, %v1113
        %v1146 = vadd.f32 %v1015, %v1114
        %v1147 = vadd.f32 %v1016, %v1115
        %v1148 = vadd.f32 %v1017, %v1116
        %v1149 = vadd.f32 %v1018, %v1117
        %v1150 = vadd.f32 %v1019, %v1118
        %v1151 = vadd.f32 %v1020, %v1119
        %v1152 = vadd.f32 %v1021, %v1120
        %v1153 = vadd.f32 %v1022, %v1121
        %v1154 = vadd.f32 %v1023, %v1122
        %v1155 = vadd.f32 %v1024, %v1123
        %v1156 = vadd.f32 %v1025, %v1124
        %v1157 = vadd.f32 %v1026, %v1125
        %v1158 = vadd.f32 %v1027, %v1126
        %v1159 = vadd.f32 %v1028, %v1127
        %v1160 = vadd.f32 %v1029, %v1128
        %v1161 = vadd.f32 %v1030, %v1129
        %v1162 = vadd.f32 %v1031, %v1130
        %v1163 = vadd.f32 %v1032, %v1131
        %v1164 = vadd.f32 %v1033, %v1132
        %v1165 = vadd.f32 %v1034, %v1133
        %v1166 = vadd.f32 %v1035, %v1134
        %v1167 = vadd.f32 %v1036, %v1135
        %v1168 = vadd.f32 %v1037, %v1136
        %v1169 = vadd.f32 %v1038, %v1137
        %v1170 = vadd.f32 %v1039, %v1138
        %v1171 = vadd.f32 %v1040, %v1139
        %v1172 = vld [vmem:[%s289] sm:$0x1]
        %v1173 = vlaneseq
        %v1174 = vshrl.u32 %v1173, 7
        %v1175 = vsub.s32 0, %v1174
        %v1176 = vrot.slane %v1172, %v1175
        %v1177 = vadd.f32 %v1140, %v1176
        %v1178 = vadd.f32 %v1141, %v1176
        %v1179 = vadd.f32 %v1142, %v1176
        %v1180 = vadd.f32 %v1143, %v1176
        %v1181 = vadd.f32 %v1144, %v1176
        %v1182 = vadd.f32 %v1145, %v1176
        %v1183 = vadd.f32 %v1146, %v1176
        %v1184 = vadd.f32 %v1147, %v1176
        %v1185 = vadd.f32 %v1148, %v1176
        %v1186 = vadd.f32 %v1149, %v1176
        %v1187 = vadd.f32 %v1150, %v1176
        %v1188 = vadd.f32 %v1151, %v1176
        %v1189 = vadd.f32 %v1152, %v1176
        %v1190 = vadd.f32 %v1153, %v1176
        %v1191 = vadd.f32 %v1154, %v1176
        %v1192 = vadd.f32 %v1155, %v1176
        %v1193 = vadd.f32 %v1156, %v1176
        %v1194 = vadd.f32 %v1157, %v1176
        %v1195 = vadd.f32 %v1158, %v1176
        %v1196 = vadd.f32 %v1159, %v1176
        %v1197 = vadd.f32 %v1160, %v1176
        %v1198 = vadd.f32 %v1161, %v1176
        %v1199 = vadd.f32 %v1162, %v1176
        %v1200 = vadd.f32 %v1163, %v1176
        %v1201 = vadd.f32 %v1164, %v1176
        %v1202 = vadd.f32 %v1165, %v1176
        %v1203 = vadd.f32 %v1166, %v1176
        %v1204 = vadd.f32 %v1167, %v1176
        %v1205 = vadd.f32 %v1168, %v1176
        %v1206 = vadd.f32 %v1169, %v1176
        %v1207 = vadd.f32 %v1170, %v1176
        %v1208 = vadd.f32 %v1171, %v1176
        %v1209 = vmax.f32 %v1177, 0.0
        %v1210 = vmax.f32 %v1178, 0.0
        %v1211 = vmax.f32 %v1179, 0.0
        %v1212 = vmax.f32 %v1180, 0.0
        %v1213 = vmax.f32 %v1181, 0.0
        %v1214 = vmax.f32 %v1182, 0.0
        %v1215 = vmax.f32 %v1183, 0.0
        %v1216 = vmax.f32 %v1184, 0.0
        %v1217 = vmax.f32 %v1185, 0.0
        %v1218 = vmax.f32 %v1186, 0.0
        %v1219 = vmax.f32 %v1187, 0.0
        %v1220 = vmax.f32 %v1188, 0.0
        %v1221 = vmax.f32 %v1189, 0.0
        %v1222 = vmax.f32 %v1190, 0.0
        %v1223 = vmax.f32 %v1191, 0.0
        %v1224 = vmax.f32 %v1192, 0.0
        %v1225 = vmax.f32 %v1193, 0.0
        %v1226 = vmax.f32 %v1194, 0.0
        %v1227 = vmax.f32 %v1195, 0.0
        %v1228 = vmax.f32 %v1196, 0.0
        %v1229 = vmax.f32 %v1197, 0.0
        %v1230 = vmax.f32 %v1198, 0.0
        %v1231 = vmax.f32 %v1199, 0.0
        %v1232 = vmax.f32 %v1200, 0.0
        %v1233 = vmax.f32 %v1201, 0.0
        %v1234 = vmax.f32 %v1202, 0.0
        %v1235 = vmax.f32 %v1203, 0.0
        %v1236 = vmax.f32 %v1204, 0.0
        %v1237 = vmax.f32 %v1205, 0.0
        %v1238 = vmax.f32 %v1206, 0.0
        %v1239 = vmax.f32 %v1207, 0.0
        %v1240 = vmax.f32 %v1208, 0.0
        %v1241 = vld [vmem:[%s289 + $0x1] sm:$0x1]
        %v1242 = vlaneseq
        %v1243 = vshrl.u32 %v1242, 7
        %v1244 = vsub.s32 0, %v1243
        %v1245 = vrot.slane %v1241, %v1244
        %v1246 = vmul.f32 %v1209, %v1245
        %v1247 = vmul.f32 %v1210, %v1245
        %v1248 = vmul.f32 %v1211, %v1245
        %v1249 = vmul.f32 %v1212, %v1245
        %v1250 = vmul.f32 %v1213, %v1245
        %v1251 = vmul.f32 %v1214, %v1245
        %v1252 = vmul.f32 %v1215, %v1245
        %v1253 = vmul.f32 %v1216, %v1245
        %v1254 = vmul.f32 %v1217, %v1245
        %v1255 = vmul.f32 %v1218, %v1245
        %v1256 = vmul.f32 %v1219, %v1245
        %v1257 = vmul.f32 %v1220, %v1245
        %v1258 = vmul.f32 %v1221, %v1245
        %v1259 = vmul.f32 %v1222, %v1245
        %v1260 = vmul.f32 %v1223, %v1245
        %v1261 = vmul.f32 %v1224, %v1245
        %v1262 = vmul.f32 %v1225, %v1245
        %v1263 = vmul.f32 %v1226, %v1245
        %v1264 = vmul.f32 %v1227, %v1245
        %v1265 = vmul.f32 %v1228, %v1245
        %v1266 = vmul.f32 %v1229, %v1245
        %v1267 = vmul.f32 %v1230, %v1245
        %v1268 = vmul.f32 %v1231, %v1245
        %v1269 = vmul.f32 %v1232, %v1245
        %v1270 = vmul.f32 %v1233, %v1245
        %v1271 = vmul.f32 %v1234, %v1245
        %v1272 = vmul.f32 %v1235, %v1245
        %v1273 = vmul.f32 %v1236, %v1245
        %v1274 = vmul.f32 %v1237, %v1245
        %v1275 = vmul.f32 %v1238, %v1245
        %v1276 = vmul.f32 %v1239, %v1245
        %v1277 = vmul.f32 %v1240, %v1245
        %v1278 = vld [vmem:[%s289 + $0x2] sm:$0x1]
        %v1279 = vlaneseq
        %v1280 = vshrl.u32 %v1279, 7
        %v1281 = vsub.s32 0, %v1280
        %v1282 = vrot.slane %v1278, %v1281
        %v1283 = vadd.f32 %v1246, %v1282
        %v1284 = vadd.f32 %v1247, %v1282
        %v1285 = vadd.f32 %v1248, %v1282
        %v1286 = vadd.f32 %v1249, %v1282
        %v1287 = vadd.f32 %v1250, %v1282
        %v1288 = vadd.f32 %v1251, %v1282
        %v1289 = vadd.f32 %v1252, %v1282
        %v1290 = vadd.f32 %v1253, %v1282
        %v1291 = vadd.f32 %v1254, %v1282
        %v1292 = vadd.f32 %v1255, %v1282
        %v1293 = vadd.f32 %v1256, %v1282
        %v1294 = vadd.f32 %v1257, %v1282
        %v1295 = vadd.f32 %v1258, %v1282
        %v1296 = vadd.f32 %v1259, %v1282
        %v1297 = vadd.f32 %v1260, %v1282
        %v1298 = vadd.f32 %v1261, %v1282
        %v1299 = vadd.f32 %v1262, %v1282
        %v1300 = vadd.f32 %v1263, %v1282
        %v1301 = vadd.f32 %v1264, %v1282
        %v1302 = vadd.f32 %v1265, %v1282
        %v1303 = vadd.f32 %v1266, %v1282
        %v1304 = vadd.f32 %v1267, %v1282
        %v1305 = vadd.f32 %v1268, %v1282
        %v1306 = vadd.f32 %v1269, %v1282
        %v1307 = vadd.f32 %v1270, %v1282
        %v1308 = vadd.f32 %v1271, %v1282
        %v1309 = vadd.f32 %v1272, %v1282
        %v1310 = vadd.f32 %v1273, %v1282
        %v1311 = vadd.f32 %v1274, %v1282
        %v1312 = vadd.f32 %v1275, %v1282
        %v1313 = vadd.f32 %v1276, %v1282
        %v1314 = vadd.f32 %v1277, %v1282
        %v1315 = vpack.c.bf16 %v1284, %v1283
        %v1316 = vpack.c.bf16 %v1286, %v1285
        %v1317 = vpack.c.bf16 %v1288, %v1287
        %v1318 = vpack.c.bf16 %v1290, %v1289
        %v1319 = vpack.c.bf16 %v1292, %v1291
        %v1320 = vpack.c.bf16 %v1294, %v1293
        %v1321 = vpack.c.bf16 %v1296, %v1295
        %v1322 = vpack.c.bf16 %v1298, %v1297
        %v1323 = vpack.c.bf16 %v1300, %v1299
        %v1324 = vpack.c.bf16 %v1302, %v1301
        %v1325 = vpack.c.bf16 %v1304, %v1303
        %v1326 = vpack.c.bf16 %v1306, %v1305
        %v1327 = vpack.c.bf16 %v1308, %v1307
        %v1328 = vpack.c.bf16 %v1310, %v1309
        %v1329 = vpack.c.bf16 %v1312, %v1311
        %v1330 = vpack.c.bf16 %v1314, %v1313
        %1331 = vst [vmem:[#allocation2] sm:$0xff] %v1315
        %1332 = vst [vmem:[#allocation2 + $0x8] sm:$0xff] %v1316
        %1333 = vst [vmem:[#allocation2 + $0x10] sm:$0xff] %v1317
        %1334 = vst [vmem:[#allocation2 + $0x18] sm:$0xff] %v1318
        %1335 = vst [vmem:[#allocation2 + $0x20] sm:$0xff] %v1319
        %1336 = vst [vmem:[#allocation2 + $0x28] sm:$0xff] %v1320
        %1337 = vst [vmem:[#allocation2 + $0x30] sm:$0xff] %v1321
        %1338 = vst [vmem:[#allocation2 + $0x38] sm:$0xff] %v1322
        %1339 = vst [vmem:[#allocation2 + $0x40] sm:$0xff] %v1323
        %1340 = vst [vmem:[#allocation2 + $0x48] sm:$0xff] %v1324
        %1341 = vst [vmem:[#allocation2 + $0x50] sm:$0xff] %v1325
        %1342 = vst [vmem:[#allocation2 + $0x58] sm:$0xff] %v1326
        %1343 = vst [vmem:[#allocation2 + $0x60] sm:$0xff] %v1327
        %1344 = vst [vmem:[#allocation2 + $0x68] sm:$0xff] %v1328
        %1345 = vst [vmem:[#allocation2 + $0x70] sm:$0xff] %v1329
        %1346 = vst [vmem:[#allocation2 + $0x78] sm:$0xff] %v1330
        %p1347 = scmp.eq.s32.totalorder %s25, 1
        // Predicated region
        $region49: #{tpu_custom_call.1} parent=39 // pred_check
          %p1348 = pneg %p1347
        $region50: #{tpu_custom_call.1} parent=39 // pred_check_branch
          %1350 = sbr.rel (%p1348) target = $region52
        $region51: #{tpu_custom_call.1} parent=39 // pred_region
          %v1351 = vadd.f32 %v1283, %v1284
          %v1352 = vrot.slane %v1351, 4
          %v1353 = vadd.f32 %v1351, %v1352
          %v1354 = vrot.slane %v1353, 2
          %v1355 = vadd.f32 %v1353, %v1354
          %v1356 = vrot.slane %v1355, 1
          %v1357 = vadd.f32 %v1355, %v1356
          %v1358 = vadd.f32 %v1285, %v1286
          %v1359 = vrot.slane %v1358, 4
          %v1360 = vadd.f32 %v1358, %v1359
          %v1361 = vrot.slane %v1360, 2
          %v1362 = vadd.f32 %v1360, %v1361
          %v1363 = vrot.slane %v1362, 1
          %v1364 = vadd.f32 %v1362, %v1363
          %v1365 = vadd.f32 %v1287, %v1288
          %v1366 = vrot.slane %v1365, 4
          %v1367 = vadd.f32 %v1365, %v1366
          %v1368 = vrot.slane %v1367, 2
          %v1369 = vadd.f32 %v1367, %v1368
          %v1370 = vrot.slane %v1369, 1
          %v1371 = vadd.f32 %v1369, %v1370
          %v1372 = vadd.f32 %v1289, %v1290
          %v1373 = vrot.slane %v1372, 4
          %v1374 = vadd.f32 %v1372, %v1373
          %v1375 = vrot.slane %v1374, 2
          %v1376 = vadd.f32 %v1374, %v1375
          %v1377 = vrot.slane %v1376, 1
          %v1378 = vadd.f32 %v1376, %v1377
          %v1379 = vadd.f32 %v1291, %v1292
          %v1380 = vrot.slane %v1379, 4
          %v1381 = vadd.f32 %v1379, %v1380
          %v1382 = vrot.slane %v1381, 2
          %v1383 = vadd.f32 %v1381, %v1382
          %v1384 = vrot.slane %v1383, 1
          %v1385 = vadd.f32 %v1383, %v1384
          %v1386 = vadd.f32 %v1293, %v1294
          %v1387 = vrot.slane %v1386, 4
          %v1388 = vadd.f32 %v1386, %v1387
          %v1389 = vrot.slane %v1388, 2
          %v1390 = vadd.f32 %v1388, %v1389
          %v1391 = vrot.slane %v1390, 1
          %v1392 = vadd.f32 %v1390, %v1391
          %v1393 = vadd.f32 %v1295, %v1296
          %v1394 = vrot.slane %v1393, 4
          %v1395 = vadd.f32 %v1393, %v1394
          %v1396 = vrot.slane %v1395, 2
          %v1397 = vadd.f32 %v1395, %v1396
          %v1398 = vrot.slane %v1397, 1
          %v1399 = vadd.f32 %v1397, %v1398
          %v1400 = vadd.f32 %v1297, %v1298
          %v1401 = vrot.slane %v1400, 4
          %v1402 = vadd.f32 %v1400, %v1401
          %v1403 = vrot.slane %v1402, 2
          %v1404 = vadd.f32 %v1402, %v1403
          %v1405 = vrot.slane %v1404, 1
          %v1406 = vadd.f32 %v1404, %v1405
          %v1407 = vadd.f32 %v1299, %v1300
          %v1408 = vrot.slane %v1407, 4
          %v1409 = vadd.f32 %v1407, %v1408
          %v1410 = vrot.slane %v1409, 2
          %v1411 = vadd.f32 %v1409, %v1410
          %v1412 = vrot.slane %v1411, 1
          %v1413 = vadd.f32 %v1411, %v1412
          %v1414 = vadd.f32 %v1301, %v1302
          %v1415 = vrot.slane %v1414, 4
          %v1416 = vadd.f32 %v1414, %v1415
          %v1417 = vrot.slane %v1416, 2
          %v1418 = vadd.f32 %v1416, %v1417
          %v1419 = vrot.slane %v1418, 1
          %v1420 = vadd.f32 %v1418, %v1419
          %v1421 = vadd.f32 %v1303, %v1304
          %v1422 = vrot.slane %v1421, 4
          %v1423 = vadd.f32 %v1421, %v1422
          %v1424 = vrot.slane %v1423, 2
          %v1425 = vadd.f32 %v1423, %v1424
          %v1426 = vrot.slane %v1425, 1
          %v1427 = vadd.f32 %v1425, %v1426
          %v1428 = vadd.f32 %v1305, %v1306
          %v1429 = vrot.slane %v1428, 4
          %v1430 = vadd.f32 %v1428, %v1429
          %v1431 = vrot.slane %v1430, 2
          %v1432 = vadd.f32 %v1430, %v1431
          %v1433 = vrot.slane %v1432, 1
          %v1434 = vadd.f32 %v1432, %v1433
          %v1435 = vadd.f32 %v1307, %v1308
          %v1436 = vrot.slane %v1435, 4
          %v1437 = vadd.f32 %v1435, %v1436
          %v1438 = vrot.slane %v1437, 2
          %v1439 = vadd.f32 %v1437, %v1438
          %v1440 = vrot.slane %v1439, 1
          %v1441 = vadd.f32 %v1439, %v1440
          %v1442 = vadd.f32 %v1309, %v1310
          %v1443 = vrot.slane %v1442, 4
          %v1444 = vadd.f32 %v1442, %v1443
          %v1445 = vrot.slane %v1444, 2
          %v1446 = vadd.f32 %v1444, %v1445
          %v1447 = vrot.slane %v1446, 1
          %v1448 = vadd.f32 %v1446, %v1447
          %v1449 = vadd.f32 %v1311, %v1312
          %v1450 = vrot.slane %v1449, 4
          %v1451 = vadd.f32 %v1449, %v1450
          %v1452 = vrot.slane %v1451, 2
          %v1453 = vadd.f32 %v1451, %v1452
          %v1454 = vrot.slane %v1453, 1
          %v1455 = vadd.f32 %v1453, %v1454
          %v1456 = vadd.f32 %v1313, %v1314
          %v1457 = vrot.slane %v1456, 4
          %v1458 = vadd.f32 %v1456, %v1457
          %v1459 = vrot.slane %v1458, 2
          %v1460 = vadd.f32 %v1458, %v1459
          %v1461 = vrot.slane %v1460, 1
          %v1462 = vadd.f32 %v1460, %v1461
          %v1463 = vpack.c.bf16 %v1357, %v1357
          %v1464 = vpack.c.bf16 %v1364, %v1364
          %v1465 = vpack.c.bf16 %v1371, %v1371
          %v1466 = vpack.c.bf16 %v1378, %v1378
          %v1467 = vpack.c.bf16 %v1385, %v1385
          %v1468 = vpack.c.bf16 %v1392, %v1392
          %v1469 = vpack.c.bf16 %v1399, %v1399
          %v1470 = vpack.c.bf16 %v1406, %v1406
          %v1471 = vpack.c.bf16 %v1413, %v1413
          %v1472 = vpack.c.bf16 %v1420, %v1420
          %v1473 = vpack.c.bf16 %v1427, %v1427
          %v1474 = vpack.c.bf16 %v1434, %v1434
          %v1475 = vpack.c.bf16 %v1441, %v1441
          %v1476 = vpack.c.bf16 %v1448, %v1448
          %v1477 = vpack.c.bf16 %v1455, %v1455
          %v1478 = vpack.c.bf16 %v1462, %v1462
          %v1479 = vld [vmem:[%s3] sm:$0xf]
          %v1480 = vld [vmem:[%s3 + $0x4] sm:$0xf]
          %v1481 = vld [vmem:[%s3 + $0x8] sm:$0xf]
          %v1482 = vld [vmem:[%s3 + $0xc] sm:$0xf]
          %v1483 = vld [vmem:[%s3 + $0x10] sm:$0xf]
          %v1484 = vld [vmem:[%s3 + $0x14] sm:$0xf]
          %v1485 = vld [vmem:[%s3 + $0x18] sm:$0xf]
          %v1486 = vld [vmem:[%s3 + $0x1c] sm:$0xf]
          %v1487 = vld [vmem:[%s3 + $0x20] sm:$0xf]
          %v1488 = vld [vmem:[%s3 + $0x24] sm:$0xf]
          %v1489 = vld [vmem:[%s3 + $0x28] sm:$0xf]
          %v1490 = vld [vmem:[%s3 + $0x2c] sm:$0xf]
          %v1491 = vld [vmem:[%s3 + $0x30] sm:$0xf]
          %v1492 = vld [vmem:[%s3 + $0x34] sm:$0xf]
          %v1493 = vld [vmem:[%s3 + $0x38] sm:$0xf]
          %v1494 = vld [vmem:[%s3 + $0x3c] sm:$0xf]
          %v1495 = vld [vmem:[%s4] sm:$0x1]
          %v1497 = vlaneseq
          %v1498 = vshrl.u32 %v1497, 7
          %v1499 = vsub.s32 0, %v1498
          %v1500 = vrot.slane %v1495, %v1499
          %v1518 = vunpack.c.l.b16 %v1463
          %v1519 = vunpack.c.l.b16 %v1464
          %v1520 = vunpack.c.l.b16 %v1465
          %v1521 = vunpack.c.l.b16 %v1466
          %v1522 = vunpack.c.l.b16 %v1467
          %v1523 = vunpack.c.l.b16 %v1468
          %v1524 = vunpack.c.l.b16 %v1469
          %v1525 = vunpack.c.l.b16 %v1470
          %v1526 = vunpack.c.l.b16 %v1471
          %v1527 = vunpack.c.l.b16 %v1472
          %v1528 = vunpack.c.l.b16 %v1473
          %v1529 = vunpack.c.l.b16 %v1474
          %v1530 = vunpack.c.l.b16 %v1475
          %v1531 = vunpack.c.l.b16 %v1476
          %v1532 = vunpack.c.l.b16 %v1477
          %v1533 = vunpack.c.l.b16 %v1478
          %vm1534 = vcmask 1041409
          %v1535 = vsel %vm1534, %v1519, %v1518
          %vm1536 = vcmask 1042434
          %v1537 = vsel %vm1536, %v1520, %v1535
          %vm1538 = vcmask 1043459
          %v1539 = vsel %vm1538, %v1521, %v1537
          %vm1540 = vcmask 1044484
          %v1541 = vsel %vm1540, %v1522, %v1539
          %vm1542 = vcmask 1045509
          %v1543 = vsel %vm1542, %v1523, %v1541
          %vm1544 = vcmask 1046534
          %v1545 = vsel %vm1544, %v1524, %v1543
          %vm1546 = vcmask 1047559
          %v1547 = vsel %vm1546, %v1525, %v1545
          %v1548 = vsel %vm1534, %v1527, %v1526
          %v1549 = vsel %vm1536, %v1528, %v1548
          %v1550 = vsel %vm1538, %v1529, %v1549
          %v1551 = vsel %vm1540, %v1530, %v1550
          %v1552 = vsel %vm1542, %v1531, %v1551
          %v1553 = vsel %vm1544, %v1532, %v1552
          %v1554 = vsel %vm1546, %v1533, %v1553
          %v1555 = vpack.c.b16 %v1554, %v1547
          %v1573 = vunpack.c.l.b16 %v1479
          %v1574 = vunpack.c.l.b16 %v1480
          %v1575 = vunpack.c.l.b16 %v1481
          %v1576 = vunpack.c.l.b16 %v1482
          %v1577 = vunpack.c.l.b16 %v1483
          %v1578 = vunpack.c.l.b16 %v1484
          %v1579 = vunpack.c.l.b16 %v1485
          %v1580 = vunpack.c.l.b16 %v1486
          %v1581 = vunpack.c.l.b16 %v1487
          %v1582 = vunpack.c.l.b16 %v1488
          %v1583 = vunpack.c.l.b16 %v1489
          %v1584 = vunpack.c.l.b16 %v1490
          %v1585 = vunpack.c.l.b16 %v1491
          %v1586 = vunpack.c.l.b16 %v1492
          %v1587 = vunpack.c.l.b16 %v1493
          %v1588 = vunpack.c.l.b16 %v1494
          %v1589 = vpack.c.b16 %v1574, %v1573
          %v1590 = vpack.c.b16 %v1576, %v1575
          %v1591 = vpack.c.b16 %v1578, %v1577
          %v1592 = vpack.c.b16 %v1580, %v1579
          %v1593 = vpack.c.b16 %v1582, %v1581
          %v1594 = vpack.c.b16 %v1584, %v1583
          %v1595 = vpack.c.b16 %v1586, %v1585
          %v1596 = vpack.c.b16 %v1588, %v1587
          %1605 = vmatprep.subr.bf16.mxu0 0
          %1606 = vmatpush1.bf16.msra.mxu0 %v1589
          %1607 = vmatprep.subr.bf16.mxu0 0
          %1608 = vmatpush1.bf16.msra.mxu0 %v1590
          %1609 = vmatprep.subr.bf16.mxu0 0
          %1610 = vmatpush1.bf16.msra.mxu0 %v1591
          %1611 = vmatprep.subr.bf16.mxu0 0
          %1612 = vmatpush1.bf16.msra.mxu0 %v1592
          %1613 = vmatprep.subr.bf16.mxu0 0
          %1614 = vmatpush1.bf16.msra.mxu0 %v1593
          %1615 = vmatprep.subr.bf16.mxu0 0
          %1616 = vmatpush1.bf16.msra.mxu0 %v1594
          %1617 = vmatprep.subr.bf16.mxu0 0
          %1618 = vmatpush1.bf16.msra.mxu0 %v1595
          %1619 = vmatprep.subr.bf16.mxu0 0
          %1620 = vmatpush1.bf16.msra.mxu0 %v1596
          %1621 = vmatprep.subr.bf16.mxu0 0
          %1622 = vmatpush1.bf16.msra.mxu0 0
          %1623 = vmatprep.subr.bf16.mxu0 0
          %1624 = vmatpush1.bf16.msra.mxu0 0
          %1625 = vmatprep.subr.bf16.mxu0 0
          %1626 = vmatpush1.bf16.msra.mxu0 0
          %1627 = vmatprep.subr.bf16.mxu0 0
          %1628 = vmatpush1.bf16.msra.mxu0 0
          %1629 = vmatprep.subr.bf16.mxu0 0
          %1630 = vmatpush1.bf16.msra.mxu0 0
          %1631 = vmatprep.subr.bf16.mxu0 0
          %1632 = vmatpush1.bf16.msra.mxu0 0
          %1633 = vmatprep.subr.bf16.mxu0 0
          %1634 = vmatpush1.bf16.msra.mxu0 0
          %1635 = vmatprep.subr.bf16.mxu0 0
          %1636 = vmatpush1.bf16.msra.mxu0 0
          %1637 = vmatprep.mubr.bf16.mxu0 0
          %1638 = vmatmul.mubr.bf16.gmra.mrb[0].mxu0 %v1555
          %v1639 = vpop.f32.mrb[0].mxu0
          %v1640 = vadd.f32 %v1500, %v1639
          %v1641 = vpop.f32.mrb[0].mxu0
          %v1642 = vpop.f32.mrb[0].mxu0
          %v1643 = vadd.f32 %v1500, %v1642
          %v1644 = vpop.f32.mrb[0].mxu0
          %1645 = vdwg.mxu0
          %1646 = vst [vmem:[#allocation6] sm:$0xff] %v1640
          %1647 = vst [vmem:[#allocation6 + $0x8] sm:$0xff] %v1643
        $region52: #{tpu_custom_call.1} parent=39 // pred_fallthru
          _
        // Predicated region
        $region53: #{tpu_custom_call.1} parent=39 // pred_check
          %p1648 = pneg %p170
        $region54: #{tpu_custom_call.1} parent=39 // pred_check_branch
          %1650 = sbr.rel (%p1648) target = $region56
        $region55: #{tpu_custom_call.1} parent=39 // pred_region
          %s1651 = smul.u32 2, %s24
          %s1653 = ssub.s32 256, 256
          %1654 = vsyncadd [#allocation5], %s1653
          %s1655 = smul.addr %s1651, 128
          %s1656 = scalar_lea.hbm %s5, %s1655
          %s1657 = sshll.u32 [#allocation6], 4
          %s1658 = int_to_ptr.vmem [resolvable:$true] %s1657
          %1663 = dma.vmem_to_hbm [thread:$0]  %s1658, 256, %s1656, [#allocation5], 128, 128, 8
        $region56: #{tpu_custom_call.1} parent=39 // pred_fallthru
          _
        // Predicated region
        $region57: #{tpu_custom_call.1} parent=39 // pred_check
          %p1664 = pneg %p170
        $region58: #{tpu_custom_call.1} parent=39 // pred_check_branch
          %1666 = sbr.rel (%p1664) target = $region60
        $region59: #{tpu_custom_call.1} parent=39 // pred_region
          %1667 = dma.done [#allocation5], 256
        $region60: #{tpu_custom_call.1} parent=39 // pred_fallthru
          _
      $region40: #{tpu_custom_call.1} parent=5 // pred_fallthru
        _
      %p1668 = scmp.le.s32.totalorder 2, %s15
      // Predicated region
      $region61: #{tpu_custom_call.1} parent=5 // pred_check
        %p1669 = pneg %p1668
      $region62: #{tpu_custom_call.1} parent=5 // pred_check_branch
        %1671 = sbr.rel (%p1669) target = $region64
      $region63: #{tpu_custom_call.1} parent=5 // pred_region
        %s1672 = ssub.s32 %s15, 2
      $region64: #{tpu_custom_call.1} parent=5 // pred_fallthru
        _
    $region6: #{tpu_custom_call.1} parent=1 // loop_footer
      %s19 = sadd.s32 1, %s15
    $region7: #{tpu_custom_call.1} parent=1 // loop_footer_branch
      %14 = sbr.rel target = $region3
    $region8: #{tpu_custom_call.1} parent=1 // loop_exit
      _
    %1673 = vsyncpa [#allocation4], 1
    %s1674 = scalar_lea.sflag [#allocation4], 1
    %1675 = vsyncpa %s1674, 1
    %1676 = vsyncpa [#allocation5], 1
    %s1677 = scalar_lea.sflag [#allocation5], 1
    %1678 = vsyncpa %s1677, 1

</llo_original>
